<compile_context>
chip_gen: v7x
topology: tpu7x:2x2x1
jax: 0.10.0
libtpu: 0.0.40
codegen_flags: <defaults>
</compile_context>

<pallas_src>
import functools
import math

import jax
import jax.numpy as jnp
from jax.experimental import pallas as pl
from jax.experimental.pallas import tpu as pltpu

# Stand-in for config.MODEL.NUM_INPUT_FEATURES (only used for `current_level`, logging-only).
NUM_INPUT_FEATURES = 4


def _round_up(x, m):
    return (x + m - 1) // m * m


def _pick_tile(size, candidates=(512, 256, 128)):
    for c in candidates:
        if size % c == 0:
            return c
    return size


# --------------------------- Pallas GEMM (lane-dense, bf16, tiled) ---------------------------

def _matmul_kernel(a_ref, b_ref, o_ref, acc_ref):
    @pl.when(pl.program_id(1) == 0)
    def _():
        acc_ref[...] = jnp.zeros_like(acc_ref)

    acc_ref[...] += jnp.dot(a_ref[...], b_ref[...], preferred_element_type=jnp.float32)

    @pl.when(pl.program_id(1) == pl.num_programs(1) - 1)
    def _():
        o_ref[...] = acc_ref[...]


def pallas_matmul(wm, pm):
    """(Cout, K) @ (K, M) -> (Cout, M) f32.

    Lane-dense output (long M = N*Do*Ho*Wo axis on lanes), bf16 operands, f32 VMEM accumulator,
    M tiled 'parallel', K (reduction) tiled last and 'arbitrary'.
    """
    Cout, K = wm.shape
    K2, M = pm.shape
    assert K == K2
    Cp = _round_up(Cout, 16)          # sublane-pad the tiny Cout axis
    Mp = _round_up(M, 128)            # lane-pad spatial axis
    if K <= 512:                      # small contraction: single K step, minimal padding
        Kp = _round_up(K, 16)
        tk = Kp
    else:
        Kp = _round_up(K, 128)
        tk = _pick_tile(Kp)
    tm = _pick_tile(Mp)

    a = jnp.pad(wm, ((0, Cp - Cout), (0, Kp - K))).astype(jnp.bfloat16)
    b = jnp.pad(pm, ((0, Kp - K), (0, Mp - M))).astype(jnp.bfloat16)

    out = pl.pallas_call(
        _matmul_kernel,
        out_shape=jax.ShapeDtypeStruct((Cp, Mp), jnp.float32),
        grid=(Mp // tm, Kp // tk),
        in_specs=[
            pl.BlockSpec((Cp, tk), lambda i, k: (0, k)),
            pl.BlockSpec((tk, tm), lambda i, k: (k, i)),
        ],
        out_specs=pl.BlockSpec((Cp, tm), lambda i, k: (0, i)),
        scratch_shapes=[pltpu.VMEM((Cp, tm), jnp.float32)],
        compiler_params=pltpu.CompilerParams(
            dimension_semantics=("parallel", "arbitrary")),
    )(a, b)
    return out[:Cout, :M]


# --------------------------- fused InstanceNorm / residual kernels ---------------------------

def _in_kernel(x_ref, o_ref, *, eps, relu):
    x = x_ref[...]
    mean = jnp.mean(x, axis=-1, keepdims=True)
    xc = x - mean
    var = jnp.mean(xc * xc, axis=-1, keepdims=True)     # biased var (PyTorch InstanceNorm3d)
    y = xc * jax.lax.rsqrt(var + eps)
    if relu:
        y = jnp.maximum(y, 0.0)
    o_ref[...] = y


def _in_add_relu_kernel(x_ref, r_ref, o_ref, *, eps):
    x = x_ref[...]
    mean = jnp.mean(x, axis=-1, keepdims=True)
    xc = x - mean
    var = jnp.mean(xc * xc, axis=-1, keepdims=True)
    y = xc * jax.lax.rsqrt(var + eps) + r_ref[...]
    o_ref[...] = jnp.maximum(y, 0.0)


def _rows_pallas(kernel, inputs, R, S):
    """Run a row-wise kernel on (R, S) f32 arrays, tiled over rows (full S on lanes)."""
    TR = 8
    Rp = _round_up(R, TR)
    padded = [jnp.pad(a, ((0, Rp - R), (0, 0))) if Rp != R else a for a in inputs]
    y = pl.pallas_call(
        kernel,
        out_shape=jax.ShapeDtypeStruct((Rp, S), jnp.float32),
        grid=(Rp // TR,),
        in_specs=[pl.BlockSpec((TR, S), lambda i: (i, 0)) for _ in inputs],
        out_specs=pl.BlockSpec((TR, S), lambda i: (i, 0)),
        compiler_params=pltpu.CompilerParams(dimension_semantics=("parallel",)),
    )(*padded)
    return y[:R]


def instance_norm3d(x_cf, *, relu=False, eps=1e-5):
    """nn.InstanceNorm3d(affine=False) [+ optional ReLU]; x_cf: (C, N, D, H, W) channel-first."""
    C, N, D, H, W = x_cf.shape
    R, S = C * N, D * H * W
    y = _rows_pallas(functools.partial(_in_kernel, eps=eps, relu=relu),
                     [x_cf.reshape(R, S)], R, S)
    return y.reshape(C, N, D, H, W)


def instance_norm_add_relu(x_cf, res_cf, eps=1e-5):
    """relu(InstanceNorm3d(x) + residual) fused in a single HBM pass."""
    C, N, D, H, W = x_cf.shape
    R, S = C * N, D * H * W
    y = _rows_pallas(functools.partial(_in_add_relu_kernel, eps=eps),
                     [x_cf.reshape(R, S), res_cf.reshape(R, S)], R, S)
    return y.reshape(C, N, D, H, W)


# ----------------------------- conv plumbing (glue, channel-first) ---------------------------

def conv3d(x_cf, w, *, stride=1, pad=0):
    """nn.Conv3d (bias=False) on channel-first activations.

    x_cf: (Cin, N, D, H, W); w: (Cout, Cin, kd, kh, kw);
    pad: int or ((d0,d1),(h0,h1),(w0,w1)).  Returns (Cout, N, Do, Ho, Wo) f32.
    """
    Cout, Cin, kd, kh, kw = w.shape
    if isinstance(pad, int):
        pad = ((pad, pad), (pad, pad), (pad, pad))
    _, N, D, H, W = x_cf.shape
    xp = jnp.pad(x_cf, ((0, 0), (0, 0), pad[0], pad[1], pad[2])).astype(jnp.bfloat16)
    Dp, Hp, Wp = xp.shape[2:]
    Do = (Dp - kd) // stride + 1
    Ho = (Hp - kh) // stride + 1
    Wo = (Wp - kw) // stride + 1
    taps = []
    for a in range(kd):
        for b in range(kh):
            for c in range(kw):
                taps.append(xp[:, :,
                               a:a + stride * (Do - 1) + 1:stride,
                               b:b + stride * (Ho - 1) + 1:stride,
                               c:c + stride * (Wo - 1) + 1:stride])
    # (Cin, k^3, N, Do, Ho, Wo) -> (Cin*k^3, N*Do*Ho*Wo): row order matches w.reshape(Cout, Cin*k^3),
    # the long spatial axis stays last (lane-dense), and no transpose is needed.
    patches = jnp.stack(taps, axis=1).reshape(Cin * kd * kh * kw, N * Do * Ho * Wo)
    out = pallas_matmul(w.reshape(Cout, Cin * kd * kh * kw), patches)   # hot path: Pallas GEMM
    return out.reshape(Cout, N, Do, Ho, Wo)


def conv_transpose3d_k4s2p1(x_cf, w):
    """nn.ConvTranspose3d(kernel_size=4, stride=2, padding=1, bias=False) via output-phase
    (subpixel) decomposition into 8 stride-1 convs with 2x2x2 sub-kernels (no zero-dilation).

    x_cf: (Cin, N, D, H, W); w: (Cin, Cout, 4, 4, 4) (PyTorch layout).
    Returns (Cout, N, 2D, 2H, 2W) f32.
    """
    Cin, Cout = w.shape[0], w.shape[1]
    _, N, D, H, W = x_cf.shape
    wt = jnp.transpose(w, (1, 0, 2, 3, 4))               # (Cout, Cin, 4, 4, 4) - tiny tensor
    out = jnp.zeros((Cout, N, 2 * D, 2 * H, 2 * W), jnp.float32)
    for rd in range(2):
        for rh in range(2):
            for rw in range(2):
                # phase r picks kernel taps (3-r, 1-r) along each dim; pad (1-r, r) per dim.
                wsub = jnp.take(wt, jnp.array([3 - rd, 1 - rd]), axis=2)
                wsub = jnp.take(wsub, jnp.array([3 - rh, 1 - rh]), axis=3)
                wsub = jnp.take(wsub, jnp.array([3 - rw, 1 - rw]), axis=4)
                phase = conv3d(x_cf, wsub, stride=1,
                               pad=((1 - rd, rd), (1 - rh, rh), (1 - rw, rw)))
                out = out.at[:, :, rd::2, rh::2, rw::2].set(phase)
    return out


# ----------------------------- model blocks --------------------------------------------------

# TODO(synk): ResNetBlock3d source was not provided; implemented as the standard
# conv3x3(stride) -> IN -> ReLU -> conv3x3 -> IN + (downsample-conv) skip -> ReLU block.
def resnet_block3d(x_cf, p, *, stride):
    out = conv3d(x_cf, p["conv1"], stride=stride, pad=1)
    out = instance_norm3d(out, relu=True)
    out = conv3d(out, p["conv2"], stride=1, pad=1)
    if p.get("downsample") is not None:
        identity = conv3d(x_cf, p["downsample"], stride=2, pad=1)   # k=4, s=2, p=1
    else:
        identity = x_cf
    return instance_norm_add_relu(out, identity)    # fused IN + residual add + ReLU


class BlockContent:
    def __init__(self, data, encoding, features2D=None, features=None):
        self.data = data
        self.encoding = encoding
        self.features2D = features2D
        self.features = features


def unet_block_forward(params, x: BlockContent) -> BlockContent:
    content = x.data                                       # (N, C, D, H, W), PyTorch layout
    features2D = x.features2D
    content_cf = jnp.transpose(content, (1, 0, 2, 3, 4))   # single layout transpose in
    # encoder = ResNetBlock3d(stride=2, downsample) -> ResNetBlock3d(stride=1)
    encoded = resnet_block3d(content_cf, params["enc1"], stride=2)
    encoded = resnet_block3d(encoded, params["enc2"], stride=1)
    # TODO(synk): submodule is Optional[nn.Module]; innermost identity submodule used here
    # (num_outer_features chosen == num_inner_features so the decoder input matches).
    processed = BlockContent(encoded, None, features2D)
    # decoder = ConvTranspose3d(k=4, s=2, p=1, bias=False) -> InstanceNorm3d -> ReLU
    decoded = conv_transpose3d_k4s2p1(processed.data, params["deconv"])
    decoded = instance_norm3d(decoded, relu=True)
    output_cf = jnp.concatenate([content_cf, decoded], axis=0)   # torch.cat along channel dim
    output = jnp.transpose(output_cf, (1, 0, 2, 3, 4))           # back to NCDHW
    return BlockContent(output, processed.encoding, features2D, features=[])


# ----------------------------- deterministic params ------------------------------------------

def _init_conv(key, shape):
    fan_in = math.prod(shape[1:])
    return (jax.random.normal(key, shape, jnp.float32) / math.sqrt(fan_in)).astype(jnp.float32)


def init_unet_block_params(key, num_input_features, num_inner_features,
                           num_outer_features, num_output_features):
    ks = jax.random.split(key, 6)
    ci, cm, co, cout = (num_input_features, num_inner_features,
                        num_outer_features, num_output_features)
    return {
        "enc1": {
            "conv1": _init_conv(ks[0], (cm, ci, 3, 3, 3)),
            "conv2": _init_conv(ks[1], (cm, cm, 3, 3, 3)),
            "downsample": _init_conv(ks[2], (cm, ci, 4, 4, 4)),
        },
        "enc2": {
            "conv1": _init_conv(ks[3], (cm, cm, 3, 3, 3)),
            "conv2": _init_conv(ks[4], (cm, cm, 3, 3, 3)),
            "downsample": None,
        },
        # ConvTranspose3d weight layout (Cin, Cout, k, k, k)
        "deconv": _init_conv(ks[5], (co, cout, 4, 4, 4)),
    }


# ----------------------------- main -----------------------------------------------------------

if __name__ == "__main__":
    key = jax.random.PRNGKey(0)
    kx, kp = jax.random.split(key)

    num_input_features = 4
    num_inner_features = 8
    num_outer_features = 8      # identity submodule -> outer == inner
    num_output_features = 4
    current_level = int(math.log(num_output_features // NUM_INPUT_FEATURES, 2)) \
        if num_output_features >= NUM_INPUT_FEATURES else 0  # logging-only in PyTorch

    N, D = 2, 8
    x = jax.random.normal(kx, (N, num_input_features, D, D, D), jnp.float32)
    params = init_unet_block_params(kp, num_input_features, num_inner_features,
                                    num_outer_features, num_output_features)

    fwd = jax.jit(lambda p, xa: unet_block_forward(p, BlockContent(xa, None)).data)
    result = jax.block_until_ready(fwd(params, x))

    expected = (N, num_input_features + num_output_features, D, D, D)
    assert result.shape == expected, (result.shape, expected)
    assert bool(jnp.all(jnp.isfinite(result)))
    print("KERNEL_OK")
</pallas_src>

<mosaic_0001>
module attributes {stable_mosaic.version = 11 : i64} {
  func.func @_matmul_kernel(%arg0: i32, %arg1: i32, %arg2: memref<16x256xbf16, #tpu.memory_space<vmem>>, %arg3: memref<256x128xbf16, #tpu.memory_space<vmem>>, %arg4: memref<16x128xf32, #tpu.memory_space<vmem>>, %arg5: memref<16x128xf32, #tpu.memory_space<vmem>>) attributes {dimension_semantics = [#tpu.dimension_semantics<parallel>, #tpu.dimension_semantics<arbitrary>], iteration_bounds = array<i64: 1, 1>, scalar_prefetch = 0 : i64, scratch_operands = 1 : i64, tpu.core_type = #tpu.core_type<tc>, window_params = [{transform_indices = @transform_0, window_bounds = array<i64: 16, 256>}, {transform_indices = @transform_1, window_bounds = array<i64: 256, 128>}, {transform_indices = @transform_2, window_bounds = array<i64: 16, 128>}]} {
    %c0_i32 = arith.constant 0 : i32
    %0 = arith.cmpi eq, %arg1, %c0_i32 : i32
    %1 = arith.extui %0 : i1 to i32
    %c0_i32_0 = arith.constant 0 : i32
    %2 = arith.cmpi ne, %1, %c0_i32_0 : i32
    scf.if %2 {
      %cst_10 = arith.constant 0.000000e+00 : f32
      %12 = vector.broadcast %cst_10 : f32 to vector<16x128xf32>
      %c0_11 = arith.constant 0 : index
      %c0_12 = arith.constant 0 : index
      %13 = vector.load %arg5[%c0_11, %c0_12] : memref<16x128xf32, #tpu.memory_space<vmem>>, vector<16x128xf32>
      tpu.vector_store %arg5[%c0_11, %c0_12], %12 {strides = array<i32>} : memref<16x128xf32, #tpu.memory_space<vmem>>, vector<16x128xf32>,
    } else {
    }
    %c0 = arith.constant 0 : index
    %c0_1 = arith.constant 0 : index
    %3 = vector.load %arg5[%c0, %c0_1] : memref<16x128xf32, #tpu.memory_space<vmem>>, vector<16x128xf32>
    %c0_2 = arith.constant 0 : index
    %c0_3 = arith.constant 0 : index
    %4 = vector.load %arg2[%c0_2, %c0_3] : memref<16x256xbf16, #tpu.memory_space<vmem>>, vector<16x256xbf16>
    %c0_4 = arith.constant 0 : index
    %c0_5 = arith.constant 0 : index
    %5 = vector.load %arg3[%c0_4, %c0_5] : memref<256x128xbf16, #tpu.memory_space<vmem>>, vector<256x128xbf16>
    %cst = arith.constant dense<0.000000e+00> : vector<16x128xf32>
    %6 = tpu.matmul %4, %5, %cst {dimension_numbers = #tpu.dot_dimension_numbers<[1], [0], [0], [1], [0, 0, 1, 1], [], []>} : vector<16x256xbf16>, vector<256x128xbf16>, vector<16x128xf32> -> vector<16x128xf32>
    %7 = arith.addf %3, %6 : vector<16x128xf32>
    %c0_6 = arith.constant 0 : index
    %c0_7 = arith.constant 0 : index
    %8 = vector.load %arg5[%c0_6, %c0_7] : memref<16x128xf32, #tpu.memory_space<vmem>>, vector<16x128xf32>
    tpu.vector_store %arg5[%c0_6, %c0_7], %7 {strides = array<i32>} : memref<16x128xf32, #tpu.memory_space<vmem>>, vector<16x128xf32>,
    %c0_i32_8 = arith.constant 0 : i32
    %9 = arith.cmpi eq, %arg1, %c0_i32_8 : i32
    %10 = arith.extui %9 : i1 to i32
    %c0_i32_9 = arith.constant 0 : i32
    %11 = arith.cmpi ne, %10, %c0_i32_9 : i32
    scf.if %11 {
      %c0_10 = arith.constant 0 : index
      %c0_11 = arith.constant 0 : index
      %12 = vector.load %arg5[%c0_10, %c0_11] : memref<16x128xf32, #tpu.memory_space<vmem>>, vector<16x128xf32>
      %c0_12 = arith.constant 0 : index
      %c0_13 = arith.constant 0 : index
      %13 = vector.load %arg4[%c0_12, %c0_13] : memref<16x128xf32, #tpu.memory_space<vmem>>, vector<16x128xf32>
      tpu.vector_store %arg4[%c0_12, %c0_13], %12 {strides = array<i32>} : memref<16x128xf32, #tpu.memory_space<vmem>>, vector<16x128xf32>,
    } else {
    }
    return
  }
  func.func @transform_0(%arg0: i32, %arg1: i32) -> (i32, i32) {
    %c0_i32 = arith.constant 0 : i32
    %c0_i32_0 = arith.constant 0 : i32
    return %c0_i32, %arg1 : i32, i32
  }
  func.func @transform_1(%arg0: i32, %arg1: i32) -> (i32, i32) {
    %c0_i32 = arith.constant 0 : i32
    return %arg1, %arg0 : i32, i32
  }
  func.func @transform_2(%arg0: i32, %arg1: i32) -> (i32, i32) {
    %c0_i32 = arith.constant 0 : i32
    %c0_i32_0 = arith.constant 0 : i32
    return %c0_i32, %arg0 : i32, i32
  }
}

module attributes {stable_mosaic.version = 11 : i64} {
  func.func @_in_kernel(%arg0: i32, %arg1: memref<8x64xf32, #tpu.memory_space<vmem>>, %arg2: memref<8x64xf32, #tpu.memory_space<vmem>>) attributes {dimension_semantics = [#tpu.dimension_semantics<parallel>], iteration_bounds = array<i64: 2>, scalar_prefetch = 0 : i64, scratch_operands = 0 : i64, tpu.core_type = #tpu.core_type<tc>, window_params = [{transform_indices = @transform_0, window_bounds = array<i64: 8, 64>}, {transform_indices = @transform_1, window_bounds = array<i64: 8, 64>}]} {
    %c0 = arith.constant 0 : index
    %c0_0 = arith.constant 0 : index
    %0 = vector.load %arg1[%c0, %c0_0] : memref<8x64xf32, #tpu.memory_space<vmem>>, vector<8x64xf32>
    %cst = arith.constant dense<0.000000e+00> : vector<8xf32>
    %1 = vector.multi_reduction <add>, %0, %cst [1] : vector<8x64xf32> to vector<8xf32>
    %2 = vector.shape_cast %1 : vector<8xf32> to vector<8x1xf32>
    %cst_1 = arith.constant 6.400000e+01 : f32
    %3 = vector.broadcast %cst_1 : f32 to vector<8x1xf32>
    %4 = arith.divf %2, %3 : vector<8x1xf32>
    %5 = vector.broadcast %4 : vector<8x1xf32> to vector<8x64xf32>
    %6 = arith.subf %0, %5 : vector<8x64xf32>
    %7 = arith.mulf %6, %6 : vector<8x64xf32>
    %cst_2 = arith.constant dense<0.000000e+00> : vector<8xf32>
    %8 = vector.multi_reduction <add>, %7, %cst_2 [1] : vector<8x64xf32> to vector<8xf32>
    %9 = vector.shape_cast %8 : vector<8xf32> to vector<8x1xf32>
    %cst_3 = arith.constant 6.400000e+01 : f32
    %10 = vector.broadcast %cst_3 : f32 to vector<8x1xf32>
    %11 = arith.divf %9, %10 : vector<8x1xf32>
    %cst_4 = arith.constant 9.99999974E-6 : f32
    %12 = vector.broadcast %cst_4 : f32 to vector<8x1xf32>
    %13 = arith.addf %11, %12 : vector<8x1xf32>
    %14 = math.rsqrt %13 : vector<8x1xf32>
    %15 = vector.broadcast %14 : vector<8x1xf32> to vector<8x64xf32>
    %16 = arith.mulf %6, %15 : vector<8x64xf32>
    %cst_5 = arith.constant 0.000000e+00 : f32
    %17 = vector.broadcast %cst_5 : f32 to vector<8x64xf32>
    %18 = arith.maximumf %16, %17 : vector<8x64xf32>
    %c0_6 = arith.constant 0 : index
    %c0_7 = arith.constant 0 : index
    %19 = vector.load %arg2[%c0_6, %c0_7] : memref<8x64xf32, #tpu.memory_space<vmem>>, vector<8x64xf32>
    tpu.vector_store %arg2[%c0_6, %c0_7], %18 {strides = array<i32>} : memref<8x64xf32, #tpu.memory_space<vmem>>, vector<8x64xf32>,
    return
  }
  func.func @transform_0(%arg0: i32) -> (i32, i32) {
    %c0_i32 = arith.constant 0 : i32
    %c0_i32_0 = arith.constant 0 : i32
    return %arg0, %c0_i32 : i32, i32
  }
  func.func @transform_1(%arg0: i32) -> (i32, i32) {
    %c0_i32 = arith.constant 0 : i32
    %c0_i32_0 = arith.constant 0 : i32
    return %arg0, %c0_i32 : i32, i32
  }
}

module attributes {stable_mosaic.version = 11 : i64} {
  func.func @_matmul_kernel(%arg0: i32, %arg1: i32, %arg2: memref<16x112xbf16, #tpu.memory_space<vmem>>, %arg3: memref<112x128xbf16, #tpu.memory_space<vmem>>, %arg4: memref<16x128xf32, #tpu.memory_space<vmem>>, %arg5: memref<16x128xf32, #tpu.memory_space<vmem>>) attributes {dimension_semantics = [#tpu.dimension_semantics<parallel>, #tpu.dimension_semantics<arbitrary>], iteration_bounds = array<i64: 1, 1>, scalar_prefetch = 0 : i64, scratch_operands = 1 : i64, tpu.core_type = #tpu.core_type<tc>, window_params = [{transform_indices = @transform_0, window_bounds = array<i64: 16, 112>}, {transform_indices = @transform_1, window_bounds = array<i64: 112, 128>}, {transform_indices = @transform_2, window_bounds = array<i64: 16, 128>}]} {
    %c0_i32 = arith.constant 0 : i32
    %0 = arith.cmpi eq, %arg1, %c0_i32 : i32
    %1 = arith.extui %0 : i1 to i32
    %c0_i32_0 = arith.constant 0 : i32
    %2 = arith.cmpi ne, %1, %c0_i32_0 : i32
    scf.if %2 {
      %cst_10 = arith.constant 0.000000e+00 : f32
      %12 = vector.broadcast %cst_10 : f32 to vector<16x128xf32>
      %c0_11 = arith.constant 0 : index
      %c0_12 = arith.constant 0 : index
      %13 = vector.load %arg5[%c0_11, %c0_12] : memref<16x128xf32, #tpu.memory_space<vmem>>, vector<16x128xf32>
      tpu.vector_store %arg5[%c0_11, %c0_12], %12 {strides = array<i32>} : memref<16x128xf32, #tpu.memory_space<vmem>>, vector<16x128xf32>,
    } else {
    }
    %c0 = arith.constant 0 : index
    %c0_1 = arith.constant 0 : index
    %3 = vector.load %arg5[%c0, %c0_1] : memref<16x128xf32, #tpu.memory_space<vmem>>, vector<16x128xf32>
    %c0_2 = arith.constant 0 : index
    %c0_3 = arith.constant 0 : index
    %4 = vector.load %arg2[%c0_2, %c0_3] : memref<16x112xbf16, #tpu.memory_space<vmem>>, vector<16x112xbf16>
    %c0_4 = arith.constant 0 : index
    %c0_5 = arith.constant 0 : index
    %5 = vector.load %arg3[%c0_4, %c0_5] : memref<112x128xbf16, #tpu.memory_space<vmem>>, vector<112x128xbf16>
    %cst = arith.constant dense<0.000000e+00> : vector<16x128xf32>
    %6 = tpu.matmul %4, %5, %cst {dimension_numbers = #tpu.dot_dimension_numbers<[1], [0], [0], [1], [0, 0, 1, 1], [], []>} : vector<16x112xbf16>, vector<112x128xbf16>, vector<16x128xf32> -> vector<16x128xf32>
    %7 = arith.addf %3, %6 : vector<16x128xf32>
    %c0_6 = arith.constant 0 : index
    %c0_7 = arith.constant 0 : index
    %8 = vector.load %arg5[%c0_6, %c0_7] : memref<16x128xf32, #tpu.memory_space<vmem>>, vector<16x128xf32>
    tpu.vector_store %arg5[%c0_6, %c0_7], %7 {strides = array<i32>} : memref<16x128xf32, #tpu.memory_space<vmem>>, vector<16x128xf32>,
    %c0_i32_8 = arith.constant 0 : i32
    %9 = arith.cmpi eq, %arg1, %c0_i32_8 : i32
    %10 = arith.extui %9 : i1 to i32
    %c0_i32_9 = arith.constant 0 : i32
    %11 = arith.cmpi ne, %10, %c0_i32_9 : i32
    scf.if %11 {
      %c0_10 = arith.constant 0 : index
      %c0_11 = arith.constant 0 : index
      %12 = vector.load %arg5[%c0_10, %c0_11] : memref<16x128xf32, #tpu.memory_space<vmem>>, vector<16x128xf32>
      %c0_12 = arith.constant 0 : index
      %c0_13 = arith.constant 0 : index
      %13 = vector.load %arg4[%c0_12, %c0_13] : memref<16x128xf32, #tpu.memory_space<vmem>>, vector<16x128xf32>
      tpu.vector_store %arg4[%c0_12, %c0_13], %12 {strides = array<i32>} : memref<16x128xf32, #tpu.memory_space<vmem>>, vector<16x128xf32>,
    } else {
    }
    return
  }
  func.func @transform_0(%arg0: i32, %arg1: i32) -> (i32, i32) {
    %c0_i32 = arith.constant 0 : i32
    %c0_i32_0 = arith.constant 0 : i32
    return %c0_i32, %arg1 : i32, i32
  }
  func.func @transform_1(%arg0: i32, %arg1: i32) -> (i32, i32) {
    %c0_i32 = arith.constant 0 : i32
    return %arg1, %arg0 : i32, i32
  }
  func.func @transform_2(%arg0: i32, %arg1: i32) -> (i32, i32) {
    %c0_i32 = arith.constant 0 : i32
    %c0_i32_0 = arith.constant 0 : i32
    return %c0_i32, %arg0 : i32, i32
  }
}

module attributes {stable_mosaic.version = 11 : i64} {
  func.func @_matmul_kernel(%arg0: i32, %arg1: i32, %arg2: memref<16x224xbf16, #tpu.memory_space<vmem>>, %arg3: memref<224x128xbf16, #tpu.memory_space<vmem>>, %arg4: memref<16x128xf32, #tpu.memory_space<vmem>>, %arg5: memref<16x128xf32, #tpu.memory_space<vmem>>) attributes {dimension_semantics = [#tpu.dimension_semantics<parallel>, #tpu.dimension_semantics<arbitrary>], iteration_bounds = array<i64: 1, 1>, scalar_prefetch = 0 : i64, scratch_operands = 1 : i64, tpu.core_type = #tpu.core_type<tc>, window_params = [{transform_indices = @transform_0, window_bounds = array<i64: 16, 224>}, {transform_indices = @transform_1, window_bounds = array<i64: 224, 128>}, {transform_indices = @transform_2, window_bounds = array<i64: 16, 128>}]} {
    %c0_i32 = arith.constant 0 : i32
    %0 = arith.cmpi eq, %arg1, %c0_i32 : i32
    %1 = arith.extui %0 : i1 to i32
    %c0_i32_0 = arith.constant 0 : i32
    %2 = arith.cmpi ne, %1, %c0_i32_0 : i32
    scf.if %2 {
      %cst_10 = arith.constant 0.000000e+00 : f32
      %12 = vector.broadcast %cst_10 : f32 to vector<16x128xf32>
      %c0_11 = arith.constant 0 : index
      %c0_12 = arith.constant 0 : index
      %13 = vector.load %arg5[%c0_11, %c0_12] : memref<16x128xf32, #tpu.memory_space<vmem>>, vector<16x128xf32>
      tpu.vector_store %arg5[%c0_11, %c0_12], %12 {strides = array<i32>} : memref<16x128xf32, #tpu.memory_space<vmem>>, vector<16x128xf32>,
    } else {
    }
    %c0 = arith.constant 0 : index
    %c0_1 = arith.constant 0 : index
    %3 = vector.load %arg5[%c0, %c0_1] : memref<16x128xf32, #tpu.memory_space<vmem>>, vector<16x128xf32>
    %c0_2 = arith.constant 0 : index
    %c0_3 = arith.constant 0 : index
    %4 = vector.load %arg2[%c0_2, %c0_3] : memref<16x224xbf16, #tpu.memory_space<vmem>>, vector<16x224xbf16>
    %c0_4 = arith.constant 0 : index
    %c0_5 = arith.constant 0 : index
    %5 = vector.load %arg3[%c0_4, %c0_5] : memref<224x128xbf16, #tpu.memory_space<vmem>>, vector<224x128xbf16>
    %cst = arith.constant dense<0.000000e+00> : vector<16x128xf32>
    %6 = tpu.matmul %4, %5, %cst {dimension_numbers = #tpu.dot_dimension_numbers<[1], [0], [0], [1], [0, 0, 1, 1], [], []>} : vector<16x224xbf16>, vector<224x128xbf16>, vector<16x128xf32> -> vector<16x128xf32>
    %7 = arith.addf %3, %6 : vector<16x128xf32>
    %c0_6 = arith.constant 0 : index
    %c0_7 = arith.constant 0 : index
    %8 = vector.load %arg5[%c0_6, %c0_7] : memref<16x128xf32, #tpu.memory_space<vmem>>, vector<16x128xf32>
    tpu.vector_store %arg5[%c0_6, %c0_7], %7 {strides = array<i32>} : memref<16x128xf32, #tpu.memory_space<vmem>>, vector<16x128xf32>,
    %c0_i32_8 = arith.constant 0 : i32
    %9 = arith.cmpi eq, %arg1, %c0_i32_8 : i32
    %10 = arith.extui %9 : i1 to i32
    %c0_i32_9 = arith.constant 0 : i32
    %11 = arith.cmpi ne, %10, %c0_i32_9 : i32
    scf.if %11 {
      %c0_10 = arith.constant 0 : index
      %c0_11 = arith.constant 0 : index
      %12 = vector.load %arg5[%c0_10, %c0_11] : memref<16x128xf32, #tpu.memory_space<vmem>>, vector<16x128xf32>
      %c0_12 = arith.constant 0 : index
      %c0_13 = arith.constant 0 : index
      %13 = vector.load %arg4[%c0_12, %c0_13] : memref<16x128xf32, #tpu.memory_space<vmem>>, vector<16x128xf32>
      tpu.vector_store %arg4[%c0_12, %c0_13], %12 {strides = array<i32>} : memref<16x128xf32, #tpu.memory_space<vmem>>, vector<16x128xf32>,
    } else {
    }
    return
  }
  func.func @transform_0(%arg0: i32, %arg1: i32) -> (i32, i32) {
    %c0_i32 = arith.constant 0 : i32
    %c0_i32_0 = arith.constant 0 : i32
    return %c0_i32, %arg1 : i32, i32
  }
  func.func @transform_1(%arg0: i32, %arg1: i32) -> (i32, i32) {
    %c0_i32 = arith.constant 0 : i32
    return %arg1, %arg0 : i32, i32
  }
  func.func @transform_2(%arg0: i32, %arg1: i32) -> (i32, i32) {
    %c0_i32 = arith.constant 0 : i32
    %c0_i32_0 = arith.constant 0 : i32
    return %c0_i32, %arg0 : i32, i32
  }
}

module attributes {stable_mosaic.version = 11 : i64} {
  func.func @_in_add_relu_kernel(%arg0: i32, %arg1: memref<8x64xf32, #tpu.memory_space<vmem>>, %arg2: memref<8x64xf32, #tpu.memory_space<vmem>>, %arg3: memref<8x64xf32, #tpu.memory_space<vmem>>) attributes {dimension_semantics = [#tpu.dimension_semantics<parallel>], iteration_bounds = array<i64: 2>, scalar_prefetch = 0 : i64, scratch_operands = 0 : i64, tpu.core_type = #tpu.core_type<tc>, window_params = [{transform_indices = @transform_0, window_bounds = array<i64: 8, 64>}, {transform_indices = @transform_1, window_bounds = array<i64: 8, 64>}, {transform_indices = @transform_2, window_bounds = array<i64: 8, 64>}]} {
    %c0 = arith.constant 0 : index
    %c0_0 = arith.constant 0 : index
    %0 = vector.load %arg1[%c0, %c0_0] : memref<8x64xf32, #tpu.memory_space<vmem>>, vector<8x64xf32>
    %cst = arith.constant dense<0.000000e+00> : vector<8xf32>
    %1 = vector.multi_reduction <add>, %0, %cst [1] : vector<8x64xf32> to vector<8xf32>
    %2 = vector.shape_cast %1 : vector<8xf32> to vector<8x1xf32>
    %cst_1 = arith.constant 6.400000e+01 : f32
    %3 = vector.broadcast %cst_1 : f32 to vector<8x1xf32>
    %4 = arith.divf %2, %3 : vector<8x1xf32>
    %5 = vector.broadcast %4 : vector<8x1xf32> to vector<8x64xf32>
    %6 = arith.subf %0, %5 : vector<8x64xf32>
    %7 = arith.mulf %6, %6 : vector<8x64xf32>
    %cst_2 = arith.constant dense<0.000000e+00> : vector<8xf32>
    %8 = vector.multi_reduction <add>, %7, %cst_2 [1] : vector<8x64xf32> to vector<8xf32>
    %9 = vector.shape_cast %8 : vector<8xf32> to vector<8x1xf32>
    %cst_3 = arith.constant 6.400000e+01 : f32
    %10 = vector.broadcast %cst_3 : f32 to vector<8x1xf32>
    %11 = arith.divf %9, %10 : vector<8x1xf32>
    %cst_4 = arith.constant 9.99999974E-6 : f32
    %12 = vector.broadcast %cst_4 : f32 to vector<8x1xf32>
    %13 = arith.addf %11, %12 : vector<8x1xf32>
    %14 = math.rsqrt %13 : vector<8x1xf32>
    %15 = vector.broadcast %14 : vector<8x1xf32> to vector<8x64xf32>
    %16 = arith.mulf %6, %15 : vector<8x64xf32>
    %c0_5 = arith.constant 0 : index
    %c0_6 = arith.constant 0 : index
    %17 = vector.load %arg2[%c0_5, %c0_6] : memref<8x64xf32, #tpu.memory_space<vmem>>, vector<8x64xf32>
    %18 = arith.addf %16, %17 : vector<8x64xf32>
    %cst_7 = arith.constant 0.000000e+00 : f32
    %19 = vector.broadcast %cst_7 : f32 to vector<8x64xf32>
    %20 = arith.maximumf %18, %19 : vector<8x64xf32>
    %c0_8 = arith.constant 0 : index
    %c0_9 = arith.constant 0 : index
    %21 = vector.load %arg3[%c0_8, %c0_9] : memref<8x64xf32, #tpu.memory_space<vmem>>, vector<8x64xf32>
    tpu.vector_store %arg3[%c0_8, %c0_9], %20 {strides = array<i32>} : memref<8x64xf32, #tpu.memory_space<vmem>>, vector<8x64xf32>,
    return
  }
  func.func @transform_0(%arg0: i32) -> (i32, i32) {
    %c0_i32 = arith.constant 0 : i32
    %c0_i32_0 = arith.constant 0 : i32
    return %arg0, %c0_i32 : i32, i32
  }
  func.func @transform_1(%arg0: i32) -> (i32, i32) {
    %c0_i32 = arith.constant 0 : i32
    %c0_i32_0 = arith.constant 0 : i32
    return %arg0, %c0_i32 : i32, i32
  }
  func.func @transform_2(%arg0: i32) -> (i32, i32) {
    %c0_i32 = arith.constant 0 : i32
    %c0_i32_0 = arith.constant 0 : i32
    return %arg0, %c0_i32 : i32, i32
  }
}

module attributes {stable_mosaic.version = 11 : i64} {
  func.func @_matmul_kernel(%arg0: i32, %arg1: i32, %arg2: memref<16x64xbf16, #tpu.memory_space<vmem>>, %arg3: memref<64x128xbf16, #tpu.memory_space<vmem>>, %arg4: memref<16x128xf32, #tpu.memory_space<vmem>>, %arg5: memref<16x128xf32, #tpu.memory_space<vmem>>) attributes {dimension_semantics = [#tpu.dimension_semantics<parallel>, #tpu.dimension_semantics<arbitrary>], iteration_bounds = array<i64: 1, 1>, scalar_prefetch = 0 : i64, scratch_operands = 1 : i64, tpu.core_type = #tpu.core_type<tc>, window_params = [{transform_indices = @transform_0, window_bounds = array<i64: 16, 64>}, {transform_indices = @transform_1, window_bounds = array<i64: 64, 128>}, {transform_indices = @transform_2, window_bounds = array<i64: 16, 128>}]} {
    %c0_i32 = arith.constant 0 : i32
    %0 = arith.cmpi eq, %arg1, %c0_i32 : i32
    %1 = arith.extui %0 : i1 to i32
    %c0_i32_0 = arith.constant 0 : i32
    %2 = arith.cmpi ne, %1, %c0_i32_0 : i32
    scf.if %2 {
      %cst_10 = arith.constant 0.000000e+00 : f32
      %12 = vector.broadcast %cst_10 : f32 to vector<16x128xf32>
      %c0_11 = arith.constant 0 : index
      %c0_12 = arith.constant 0 : index
      %13 = vector.load %arg5[%c0_11, %c0_12] : memref<16x128xf32, #tpu.memory_space<vmem>>, vector<16x128xf32>
      tpu.vector_store %arg5[%c0_11, %c0_12], %12 {strides = array<i32>} : memref<16x128xf32, #tpu.memory_space<vmem>>, vector<16x128xf32>,
    } else {
    }
    %c0 = arith.constant 0 : index
    %c0_1 = arith.constant 0 : index
    %3 = vector.load %arg5[%c0, %c0_1] : memref<16x128xf32, #tpu.memory_space<vmem>>, vector<16x128xf32>
    %c0_2 = arith.constant 0 : index
    %c0_3 = arith.constant 0 : index
    %4 = vector.load %arg2[%c0_2, %c0_3] : memref<16x64xbf16, #tpu.memory_space<vmem>>, vector<16x64xbf16>
    %c0_4 = arith.constant 0 : index
    %c0_5 = arith.constant 0 : index
    %5 = vector.load %arg3[%c0_4, %c0_5] : memref<64x128xbf16, #tpu.memory_space<vmem>>, vector<64x128xbf16>
    %cst = arith.constant dense<0.000000e+00> : vector<16x128xf32>
    %6 = tpu.matmul %4, %5, %cst {dimension_numbers = #tpu.dot_dimension_numbers<[1], [0], [0], [1], [0, 0, 1, 1], [], []>} : vector<16x64xbf16>, vector<64x128xbf16>, vector<16x128xf32> -> vector<16x128xf32>
    %7 = arith.addf %3, %6 : vector<16x128xf32>
    %c0_6 = arith.constant 0 : index
    %c0_7 = arith.constant 0 : index
    %8 = vector.load %arg5[%c0_6, %c0_7] : memref<16x128xf32, #tpu.memory_space<vmem>>, vector<16x128xf32>
    tpu.vector_store %arg5[%c0_6, %c0_7], %7 {strides = array<i32>} : memref<16x128xf32, #tpu.memory_space<vmem>>, vector<16x128xf32>,
    %c0_i32_8 = arith.constant 0 : i32
    %9 = arith.cmpi eq, %arg1, %c0_i32_8 : i32
    %10 = arith.extui %9 : i1 to i32
    %c0_i32_9 = arith.constant 0 : i32
    %11 = arith.cmpi ne, %10, %c0_i32_9 : i32
    scf.if %11 {
      %c0_10 = arith.constant 0 : index
      %c0_11 = arith.constant 0 : index
      %12 = vector.load %arg5[%c0_10, %c0_11] : memref<16x128xf32, #tpu.memory_space<vmem>>, vector<16x128xf32>
      %c0_12 = arith.constant 0 : index
      %c0_13 = arith.constant 0 : index
      %13 = vector.load %arg4[%c0_12, %c0_13] : memref<16x128xf32, #tpu.memory_space<vmem>>, vector<16x128xf32>
      tpu.vector_store %arg4[%c0_12, %c0_13], %12 {strides = array<i32>} : memref<16x128xf32, #tpu.memory_space<vmem>>, vector<16x128xf32>,
    } else {
    }
    return
  }
  func.func @transform_0(%arg0: i32, %arg1: i32) -> (i32, i32) {
    %c0_i32 = arith.constant 0 : i32
    %c0_i32_0 = arith.constant 0 : i32
    return %c0_i32, %arg1 : i32, i32
  }
  func.func @transform_1(%arg0: i32, %arg1: i32) -> (i32, i32) {
    %c0_i32 = arith.constant 0 : i32
    return %arg1, %arg0 : i32, i32
  }
  func.func @transform_2(%arg0: i32, %arg1: i32) -> (i32, i32) {
    %c0_i32 = arith.constant 0 : i32
    %c0_i32_0 = arith.constant 0 : i32
    return %c0_i32, %arg0 : i32, i32
  }
}

module attributes {stable_mosaic.version = 11 : i64} {
  func.func @_in_kernel(%arg0: i32, %arg1: memref<8x512xf32, #tpu.memory_space<vmem>>, %arg2: memref<8x512xf32, #tpu.memory_space<vmem>>) attributes {dimension_semantics = [#tpu.dimension_semantics<parallel>], iteration_bounds = array<i64: 1>, scalar_prefetch = 0 : i64, scratch_operands = 0 : i64, tpu.core_type = #tpu.core_type<tc>, window_params = [{transform_indices = @transform_0, window_bounds = array<i64: 8, 512>}, {transform_indices = @transform_1, window_bounds = array<i64: 8, 512>}]} {
    %c0 = arith.constant 0 : index
    %c0_0 = arith.constant 0 : index
    %0 = vector.load %arg1[%c0, %c0_0] : memref<8x512xf32, #tpu.memory_space<vmem>>, vector<8x512xf32>
    %cst = arith.constant dense<0.000000e+00> : vector<8xf32>
    %1 = vector.multi_reduction <add>, %0, %cst [1] : vector<8x512xf32> to vector<8xf32>
    %2 = vector.shape_cast %1 : vector<8xf32> to vector<8x1xf32>
    %cst_1 = arith.constant 5.120000e+02 : f32
    %3 = vector.broadcast %cst_1 : f32 to vector<8x1xf32>
    %4 = arith.divf %2, %3 : vector<8x1xf32>
    %5 = vector.broadcast %4 : vector<8x1xf32> to vector<8x512xf32>
    %6 = arith.subf %0, %5 : vector<8x512xf32>
    %7 = arith.mulf %6, %6 : vector<8x512xf32>
    %cst_2 = arith.constant dense<0.000000e+00> : vector<8xf32>
    %8 = vector.multi_reduction <add>, %7, %cst_2 [1] : vector<8x512xf32> to vector<8xf32>
    %9 = vector.shape_cast %8 : vector<8xf32> to vector<8x1xf32>
    %cst_3 = arith.constant 5.120000e+02 : f32
    %10 = vector.broadcast %cst_3 : f32 to vector<8x1xf32>
    %11 = arith.divf %9, %10 : vector<8x1xf32>
    %cst_4 = arith.constant 9.99999974E-6 : f32
    %12 = vector.broadcast %cst_4 : f32 to vector<8x1xf32>
    %13 = arith.addf %11, %12 : vector<8x1xf32>
    %14 = math.rsqrt %13 : vector<8x1xf32>
    %15 = vector.broadcast %14 : vector<8x1xf32> to vector<8x512xf32>
    %16 = arith.mulf %6, %15 : vector<8x512xf32>
    %cst_5 = arith.constant 0.000000e+00 : f32
    %17 = vector.broadcast %cst_5 : f32 to vector<8x512xf32>
    %18 = arith.maximumf %16, %17 : vector<8x512xf32>
    %c0_6 = arith.constant 0 : index
    %c0_7 = arith.constant 0 : index
    %19 = vector.load %arg2[%c0_6, %c0_7] : memref<8x512xf32, #tpu.memory_space<vmem>>, vector<8x512xf32>
    tpu.vector_store %arg2[%c0_6, %c0_7], %18 {strides = array<i32>} : memref<8x512xf32, #tpu.memory_space<vmem>>, vector<8x512xf32>,
    return
  }
  func.func @transform_0(%arg0: i32) -> (i32, i32) {
    %c0_i32 = arith.constant 0 : i32
    %c0_i32_0 = arith.constant 0 : i32
    return %arg0, %c0_i32 : i32, i32
  }
  func.func @transform_1(%arg0: i32) -> (i32, i32) {
    %c0_i32 = arith.constant 0 : i32
    %c0_i32_0 = arith.constant 0 : i32
    return %arg0, %c0_i32 : i32, i32
  }
}

</mosaic_0001>

<llo_original>
// kernel: _lambda_.21
$region0: #{_lambda_.21}
  #allocation0 [shape = 'u32[]', space=smem, size = 0x4, offset = 0x4, fixed_abs, tag = 'smem constant byte address 0x4 - core index']
  #allocation1 [shape = 'u32[144,128]{1,0:T(1,128)}', space=vmem, size = 0x12000, scoped, tag = 'internal scratch']
  #allocation2 [shape = 'f32[16,128]{1,0:T(8,128)}', space=vmem, size = 0x2000, scoped, tag = 'scratch operand']
  %s0 = inlined_call_operand.vmem [shape: bf16[16,256], index: 0, kind: input, shape index: {}]
  %s1 = inlined_call_operand.vmem [shape: bf16[256,128], index: 1, kind: input, shape index: {}]
  %s2 = inlined_call_operand.vmem [shape: f32[16,128], index: 2, kind: output, shape index: {}]
  %s3 = sld [smem:[#allocation0]]
  $region26: #{_lambda_.21} parent=0
    _
  %s5 = ssub.s32 1, %s3
  %s6 = scalar_select 0, %s5, %s3
  // Predicated region
  $region2: #{_lambda_.21} parent=0 // pred_check
    _
  $region3: #{_lambda_.21} parent=0 // pred_check_branch
    %8 = sbr.rel (0) target = $region5
  $region4: #{_lambda_.21} parent=0 // pred_region
    _
  $region5: #{_lambda_.21} parent=0 // pred_fallthru
    _
  // Predicated region
  $region6: #{_lambda_.21} parent=0 // pred_check
    _
  $region7: #{_lambda_.21} parent=0 // pred_check_branch
    %10 = sbr.rel (0) target = $region9
  $region8: #{_lambda_.21} parent=0 // pred_region
    _
  $region9: #{_lambda_.21} parent=0 // pred_fallthru
    _
  %p12 = scmp.eq.s32.totalorder 0, 0
  // Predicated region
  $region10: #{_lambda_.21} parent=0 // pred_check
    %p13 = pneg %p12
  $region11: #{_lambda_.21} parent=0 // pred_check_branch
    %15 = sbr.rel (%p13) target = $region13
  $region12: #{_lambda_.21} parent=0 // pred_region
    %16 = vst [vmem:[#allocation2] sm:$0xff] 0.0
    %17 = vst [vmem:[#allocation2 + $0x8] sm:$0xff] 0.0
  $region13: #{_lambda_.21} parent=0 // pred_fallthru
    _
  %v18 = vld [vmem:[#allocation2] sm:$0xff]
  %v19 = vld [vmem:[#allocation2 + $0x8] sm:$0xff]
  %v20 = vld [vmem:[%s0] sm:$0xff]
  %v21 = vld [vmem:[%s0 + $0x8] sm:$0xff]
  %v22 = vld [vmem:[%s1] sm:$0xf]
  %v23 = vld [vmem:[%s1 + $0x4] sm:$0xf]
  %v24 = vld [vmem:[%s1 + $0x8] sm:$0xf]
  %v25 = vld [vmem:[%s1 + $0xc] sm:$0xf]
  %v26 = vld [vmem:[%s1 + $0x10] sm:$0xf]
  %v27 = vld [vmem:[%s1 + $0x14] sm:$0xf]
  %v28 = vld [vmem:[%s1 + $0x18] sm:$0xf]
  %v29 = vld [vmem:[%s1 + $0x1c] sm:$0xf]
  %v30 = vld [vmem:[%s1 + $0x20] sm:$0xf]
  %v31 = vld [vmem:[%s1 + $0x24] sm:$0xf]
  %v32 = vld [vmem:[%s1 + $0x28] sm:$0xf]
  %v33 = vld [vmem:[%s1 + $0x2c] sm:$0xf]
  %v34 = vld [vmem:[%s1 + $0x30] sm:$0xf]
  %v35 = vld [vmem:[%s1 + $0x34] sm:$0xf]
  %v36 = vld [vmem:[%s1 + $0x38] sm:$0xf]
  %v37 = vld [vmem:[%s1 + $0x3c] sm:$0xf]
  %v38 = vld [vmem:[%s1 + $0x40] sm:$0xf]
  %v39 = vld [vmem:[%s1 + $0x44] sm:$0xf]
  %v40 = vld [vmem:[%s1 + $0x48] sm:$0xf]
  %v41 = vld [vmem:[%s1 + $0x4c] sm:$0xf]
  %v42 = vld [vmem:[%s1 + $0x50] sm:$0xf]
  %v43 = vld [vmem:[%s1 + $0x54] sm:$0xf]
  %v44 = vld [vmem:[%s1 + $0x58] sm:$0xf]
  %v45 = vld [vmem:[%s1 + $0x5c] sm:$0xf]
  %v46 = vld [vmem:[%s1 + $0x60] sm:$0xf]
  %v47 = vld [vmem:[%s1 + $0x64] sm:$0xf]
  %v48 = vld [vmem:[%s1 + $0x68] sm:$0xf]
  %v49 = vld [vmem:[%s1 + $0x6c] sm:$0xf]
  %v50 = vld [vmem:[%s1 + $0x70] sm:$0xf]
  %v51 = vld [vmem:[%s1 + $0x74] sm:$0xf]
  %v52 = vld [vmem:[%s1 + $0x78] sm:$0xf]
  %v53 = vld [vmem:[%s1 + $0x7c] sm:$0xf]
  %v56 = vunpack.c.l.b16 %v20
  %v57 = vunpack.c.h.b16 %v20
  %v58 = vunpack.c.l.b16 %v21
  %v59 = vunpack.c.h.b16 %v21
  %v60 = vpack.c.b16 %v58, %v56
  %v61 = vpack.c.b16 %v59, %v57
  %v96 = vunpack.c.l.b16 %v22
  %v97 = vunpack.c.l.b16 %v23
  %v98 = vunpack.c.l.b16 %v24
  %v99 = vunpack.c.l.b16 %v25
  %v100 = vunpack.c.l.b16 %v26
  %v101 = vunpack.c.l.b16 %v27
  %v102 = vunpack.c.l.b16 %v28
  %v103 = vunpack.c.l.b16 %v29
  %v104 = vunpack.c.l.b16 %v30
  %v105 = vunpack.c.l.b16 %v31
  %v106 = vunpack.c.l.b16 %v32
  %v107 = vunpack.c.l.b16 %v33
  %v108 = vunpack.c.l.b16 %v34
  %v109 = vunpack.c.l.b16 %v35
  %v110 = vunpack.c.l.b16 %v36
  %v111 = vunpack.c.l.b16 %v37
  %v112 = vunpack.c.l.b16 %v38
  %v113 = vunpack.c.l.b16 %v39
  %v114 = vunpack.c.l.b16 %v40
  %v115 = vunpack.c.l.b16 %v41
  %v116 = vunpack.c.l.b16 %v42
  %v117 = vunpack.c.l.b16 %v43
  %v118 = vunpack.c.l.b16 %v44
  %v119 = vunpack.c.l.b16 %v45
  %v120 = vunpack.c.l.b16 %v46
  %v121 = vunpack.c.l.b16 %v47
  %v122 = vunpack.c.l.b16 %v48
  %v123 = vunpack.c.l.b16 %v49
  %v124 = vunpack.c.l.b16 %v50
  %v125 = vunpack.c.l.b16 %v51
  %v126 = vunpack.c.l.b16 %v52
  %v127 = vunpack.c.l.b16 %v53
  %v128 = vpack.c.b16 %v97, %v96
  %v129 = vpack.c.b16 %v99, %v98
  %v130 = vpack.c.b16 %v101, %v100
  %v131 = vpack.c.b16 %v103, %v102
  %v132 = vpack.c.b16 %v105, %v104
  %v133 = vpack.c.b16 %v107, %v106
  %v134 = vpack.c.b16 %v109, %v108
  %v135 = vpack.c.b16 %v111, %v110
  %v136 = vpack.c.b16 %v113, %v112
  %v137 = vpack.c.b16 %v115, %v114
  %v138 = vpack.c.b16 %v117, %v116
  %v139 = vpack.c.b16 %v119, %v118
  %v140 = vpack.c.b16 %v121, %v120
  %v141 = vpack.c.b16 %v123, %v122
  %v142 = vpack.c.b16 %v125, %v124
  %v143 = vpack.c.b16 %v127, %v126
  %160 = vmatprep.subr.bf16.mxu0 0
  %161 = vmatpush1.bf16.msra.mxu0 %v128
  %162 = vmatprep.subr.bf16.mxu0 0
  %163 = vmatpush1.bf16.msra.mxu0 %v129
  %164 = vmatprep.subr.bf16.mxu0 0
  %165 = vmatpush1.bf16.msra.mxu0 %v130
  %166 = vmatprep.subr.bf16.mxu0 0
  %167 = vmatpush1.bf16.msra.mxu0 %v131
  %168 = vmatprep.subr.bf16.mxu0 0
  %169 = vmatpush1.bf16.msra.mxu0 %v132
  %170 = vmatprep.subr.bf16.mxu0 0
  %171 = vmatpush1.bf16.msra.mxu0 %v133
  %172 = vmatprep.subr.bf16.mxu0 0
  %173 = vmatpush1.bf16.msra.mxu0 %v134
  %174 = vmatprep.subr.bf16.mxu0 0
  %175 = vmatpush1.bf16.msra.mxu0 %v135
  %176 = vmatprep.subr.bf16.mxu0 0
  %177 = vmatpush1.bf16.msra.mxu0 %v136
  %178 = vmatprep.subr.bf16.mxu0 0
  %179 = vmatpush1.bf16.msra.mxu0 %v137
  %180 = vmatprep.subr.bf16.mxu0 0
  %181 = vmatpush1.bf16.msra.mxu0 %v138
  %182 = vmatprep.subr.bf16.mxu0 0
  %183 = vmatpush1.bf16.msra.mxu0 %v139
  %184 = vmatprep.subr.bf16.mxu0 0
  %185 = vmatpush1.bf16.msra.mxu0 %v140
  %186 = vmatprep.subr.bf16.mxu0 0
  %187 = vmatpush1.bf16.msra.mxu0 %v141
  %188 = vmatprep.subr.bf16.mxu0 0
  %189 = vmatpush1.bf16.msra.mxu0 %v142
  %190 = vmatprep.subr.bf16.mxu0 0
  %191 = vmatpush1.bf16.msra.mxu0 %v143
  %192 = vmatprep.mubr.bf16.mxu0 %v61
  %193 = vmatmul.mubr.bf16.gmra.mrb[0].mxu0 %v60
  %v194 = vpop.f32.mrb[0].mxu0
  %v195 = vadd.f32 0.0, %v194
  %v196 = vpop.f32.mrb[0].mxu0
  %v197 = vpop.f32.mrb[0].mxu0
  %v198 = vadd.f32 0.0, %v197
  %v199 = vpop.f32.mrb[0].mxu0
  %200 = vdwg.mxu0
  %v201 = vadd.f32 %v18, %v195
  %v202 = vadd.f32 %v19, %v198
  %203 = vst [vmem:[#allocation2] sm:$0xff] %v201
  %204 = vst [vmem:[#allocation2 + $0x8] sm:$0xff] %v202
  // Predicated region
  $region14: #{_lambda_.21} parent=0 // pred_check
    %p205 = pneg %p12
  $region15: #{_lambda_.21} parent=0 // pred_check_branch
    %207 = sbr.rel (%p205) target = $region17
  $region16: #{_lambda_.21} parent=0 // pred_region
    %v208 = vld [vmem:[#allocation2] sm:$0xff]
    %v209 = vld [vmem:[#allocation2 + $0x8] sm:$0xff]
    %210 = vst [vmem:[%s2] sm:$0xff] %v208
    %211 = vst [vmem:[%s2 + $0x8] sm:$0xff] %v209
  $region17: #{_lambda_.21} parent=0 // pred_fallthru
    _
  // Predicated region
  $region18: #{_lambda_.21} parent=0 // pred_check
    _
  $region19: #{_lambda_.21} parent=0 // pred_check_branch
    %213 = sbr.rel (0) target = $region21
  $region20: #{_lambda_.21} parent=0 // pred_region
    _
  $region21: #{_lambda_.21} parent=0 // pred_fallthru
    _
  // Predicated region
  $region22: #{_lambda_.21} parent=0 // pred_check
    _
  $region23: #{_lambda_.21} parent=0 // pred_check_branch
    %215 = sbr.rel (0) target = $region25
  $region24: #{_lambda_.21} parent=0 // pred_region
    _
  $region25: #{_lambda_.21} parent=0 // pred_fallthru
    _

// kernel: _lambda_.19
$region0: #{_lambda_.19}
  #allocation0 [shape = 'u32[]', space=smem, size = 0x4, offset = 0x4, fixed_abs, tag = 'smem constant byte address 0x4 - core index']
  #allocation1 [shape = 'u32[144,128]{1,0:T(1,128)}', space=vmem, size = 0x12000, scoped, tag = 'internal scratch']
  %s0 = inlined_call_operand.vmem [shape: f32[16,64], index: 0, kind: input, shape index: {}]
  %s1 = inlined_call_operand.vmem [shape: f32[16,64], index: 1, kind: output, shape index: {}]
  %s2 = sld [smem:[#allocation0]]
  $region37: #{_lambda_.19} parent=0
    _
  %s4 = ssub.s32 1, %s2
  %s5 = scalar_select 0, %s4, %s2
  loop: start=0, step=1, limit=4
  $region2: #{_lambda_.19} parent=0 // loop_pre_header
    _
  $region3: #{_lambda_.19} parent=0 // loop_header
    %s7 = sphi 0, %s11
    %p8 = scmp.ge.s32.totalorder %s7, 4
    %s17 = sphi 0, %s19
    %s20 = sphi 0, %s17
    %s21 = sphi 0, %s20
    %s37 = sphi 0, %s21
    %s43 = sphi 0, %s45
    %s46 = sphi 0, %s43
    %s47 = sphi 0, %s46
    %s63 = sphi 0, %s47
  $region4: #{_lambda_.19} parent=0 // loop_header_branch
    %10 = sbr.rel (%p8) target = $region8
  $region5: #{_lambda_.19} parent=0 // loop_body
    %s12 = ssub.s32 %s7, 1
    %s13 = ssub.s32 %s7, 2
    %s14 = sadd.s32 %s7, 1
    %s15 = ssub.s32 %s7, %s14
    %p16 = scmp.eq.s32.totalorder %s15, 0
    %s18 = sadd.s32 %s17, 1
    %s19 = scalar_select %p16, %s17, %s18
    %p22 = pneg %p16
    %p23 = scmp.eq.s32.totalorder %s7, 1
    %p24 = por %p22, %p23
    %p25 = scmp.ne.s32.totalorder %s17, %s20
    %p26 = scmp.eq.s32.totalorder %s7, 0
    %p27 = por %p25, %p26
    %p28 = scmp.ne.s32.totalorder %s17, %s20
    %p29 = scmp.eq.s32.totalorder %s12, 1
    %p30 = por %p28, %p29
    %p31 = scmp.ne.s32.totalorder %s20, %s21
    %p32 = scmp.eq.s32.totalorder %s12, 0
    %p33 = por %p31, %p32
    %p34 = scmp.ne.s32.totalorder %s20, %s21
    %p35 = scmp.eq.s32.totalorder %s13, 1
    %p36 = por %p34, %p35
    %p38 = scmp.ne.s32.totalorder %s21, %s37
    %p39 = scmp.eq.s32.totalorder %s13, 0
    %p40 = por %p38, %p39
    %s41 = ssub.s32 %s7, %s14
    %p42 = scmp.eq.s32.totalorder %s41, 0
    %s44 = sadd.s32 %s43, 1
    %s45 = scalar_select %p42, %s43, %s44
    %p48 = pneg %p42
    %p49 = scmp.eq.s32.totalorder %s7, 1
    %p50 = por %p48, %p49
    %p51 = scmp.ne.s32.totalorder %s43, %s46
    %p52 = scmp.eq.s32.totalorder %s7, 0
    %p53 = por %p51, %p52
    %p54 = scmp.ne.s32.totalorder %s43, %s46
    %p55 = scmp.eq.s32.totalorder %s12, 1
    %p56 = por %p54, %p55
    %p57 = scmp.ne.s32.totalorder %s46, %s47
    %p58 = scmp.eq.s32.totalorder %s12, 0
    %p59 = por %p57, %p58
    %p60 = scmp.ne.s32.totalorder %s46, %s47
    %p61 = scmp.eq.s32.totalorder %s13, 1
    %p62 = por %p60, %p61
    %p64 = scmp.ne.s32.totalorder %s47, %s63
    %p65 = scmp.eq.s32.totalorder %s13, 0
    %p66 = por %p64, %p65
    %p67 = scmp.le.s32.totalorder 1, %s7
    %p68 = scmp.lt.s32.totalorder %s7, 3
    %p69 = pnand %p67, %p68
    %p70 = pneg %p69
    // Predicated region
    $region9: #{_lambda_.19} parent=5 // pred_check
      _
    $region10: #{_lambda_.19} parent=5 // pred_check_branch
      %72 = sbr.rel (%p69) target = $region12
    $region11: #{_lambda_.19} parent=5 // pred_region
      %s73 = ssub.s32 %s7, 1
    $region12: #{_lambda_.19} parent=5 // pred_fallthru
      _
    %p74 = scmp.lt.s32.totalorder %s7, 2
    // Predicated region
    $region13: #{_lambda_.19} parent=5 // pred_check
      %p75 = pneg %p74
    $region14: #{_lambda_.19} parent=5 // pred_check_branch
      %77 = sbr.rel (%p75) target = $region16
    $region15: #{_lambda_.19} parent=5 // pred_region
      // Predicated region
      $region17: #{_lambda_.19} parent=15 // pred_check
        %p78 = pneg %p27
      $region18: #{_lambda_.19} parent=15 // pred_check_branch
        %80 = sbr.rel (%p78) target = $region20
      $region19: #{_lambda_.19} parent=15 // pred_region
        %p81 = scmp.lt.s32.totalorder %s7, 1
        %s82 = scalar_select %p81, %s7, 1
        %s83 = smul.addr %s82, 8
        %s84 = scalar_lea.vmem %s0, %s83
      $region20: #{_lambda_.19} parent=15 // pred_fallthru
        _
    $region16: #{_lambda_.19} parent=5 // pred_fallthru
      _
    %p85 = scmp.le.s32.totalorder 1, %s7
    %p86 = scmp.lt.s32.totalorder %s7, 3
    %p87 = pnand %p85, %p86
    %p88 = pneg %p87
    // Predicated region
    $region21: #{_lambda_.19} parent=5 // pred_check
      _
    $region22: #{_lambda_.19} parent=5 // pred_check_branch
      %90 = sbr.rel (%p87) target = $region24
    $region23: #{_lambda_.19} parent=5 // pred_region
      %s91 = ssub.s32 %s7, 1
      %p92 = scmp.lt.s32.totalorder %s12, 1
      %s93 = scalar_select %p92, %s12, 1
      %s94 = smul.addr %s93, 8
      %s95 = scalar_lea.vmem %s0, %s94
      %p96 = pneg %p33
      %p97 = pneg %p30
      %p98 = pneg %p59
      %p99 = pneg %p56
      %p100 = scmp.lt.s32.totalorder %s12, 1
      %s101 = scalar_select %p100, %s12, 1
      %s102 = smul.addr %s101, 8
      %s103 = scalar_lea.vmem %s1, %s102
      %p104 = scmp.lt.s32.totalorder %s12, 1
      %s105 = scalar_select %p104, %s12, 1
      %s106 = smul.addr %s105, 8
      %s107 = scalar_lea.vmem %s0, %s106
      %p108 = scmp.lt.s32.totalorder %s12, 1
      %s109 = scalar_select %p108, %s12, 1
      %s110 = smul.addr %s109, 8
      %s111 = scalar_lea.vmem %s1, %s110
      %v112 = vld [vmem:[%s107] sm:$0xff]
      %vm113 = vcmask 523264
      %v114 = vsel %vm113, %v112, 0.0
      %115 = vadd.xlane.f32.xlu0 %v114
      %v116 = vpop.xlane.xlu0 %115
      %v117 = vrcp.pop 64.0
      %v118 = vmul.f32 %v116, %v117
      %v119 = vsub.f32 %v112, %v118
      %v120 = vmul.f32 %v119, %v119
      %v121 = vsel %vm113, %v120, 0.0
      %122 = vadd.xlane.f32.xlu0 %v121
      %v123 = vpop.xlane.xlu0 %122
      %v124 = vmul.f32 %v123, %v117
      %v125 = vadd.f32 %v124, 1e-05
      %v126 = vrsqrt.pop %v125
      %v127 = vmul.f32 %v119, %v126
      %v128 = vmax.f32 %v127, 0.0
      %129 = vst.msk [vmem:[%s111] sm:$0xff] %vm113, %v128
      %p130 = scmp.lt.s32.totalorder %s12, 1
      %s131 = scalar_select %p130, %s12, 1
      %s132 = smul.addr %s131, 8
      %s133 = scalar_lea.vmem %s1, %s132
      // Predicated region
      $region25: #{_lambda_.19} parent=23 // pred_check
        %p134 = pneg %p56
      $region26: #{_lambda_.19} parent=23 // pred_check_branch
        %136 = sbr.rel (%p134) target = $region28
      $region27: #{_lambda_.19} parent=23 // pred_region
        _
      $region28: #{_lambda_.19} parent=23 // pred_fallthru
        _
    $region24: #{_lambda_.19} parent=5 // pred_fallthru
      _
    %p137 = scmp.le.s32.totalorder 2, %s7
    // Predicated region
    $region29: #{_lambda_.19} parent=5 // pred_check
      %p138 = pneg %p137
    $region30: #{_lambda_.19} parent=5 // pred_check_branch
      %140 = sbr.rel (%p138) target = $region32
    $region31: #{_lambda_.19} parent=5 // pred_region
      %s141 = ssub.s32 %s7, 2
      // Predicated region
      $region33: #{_lambda_.19} parent=31 // pred_check
        %p142 = pneg %p62
      $region34: #{_lambda_.19} parent=31 // pred_check_branch
        %144 = sbr.rel (%p142) target = $region36
      $region35: #{_lambda_.19} parent=31 // pred_region
        %p145 = scmp.lt.s32.totalorder %s13, 1
        %s146 = scalar_select %p145, %s13, 1
        %s147 = smul.addr %s146, 8
        %s148 = scalar_lea.vmem %s1, %s147
      $region36: #{_lambda_.19} parent=31 // pred_fallthru
        _
    $region32: #{_lambda_.19} parent=5 // pred_fallthru
      _
  $region6: #{_lambda_.19} parent=0 // loop_footer
    %s11 = sadd.s32 1, %s7
  $region7: #{_lambda_.19} parent=0 // loop_footer_branch
    %6 = sbr.rel target = $region3
  $region8: #{_lambda_.19} parent=0 // loop_exit
    _

// kernel: _lambda_.18
$region0: #{_lambda_.18}
  #allocation0 [shape = 'u32[]', space=smem, size = 0x4, offset = 0x4, fixed_abs, tag = 'smem constant byte address 0x4 - core index']
  #allocation1 [shape = 'u32[144,128]{1,0:T(1,128)}', space=vmem, size = 0x12000, scoped, tag = 'internal scratch']
  #allocation2 [shape = 'f32[16,128]{1,0:T(8,128)}', space=vmem, size = 0x2000, scoped, tag = 'scratch operand']
  %s0 = inlined_call_operand.vmem [shape: bf16[16,112], index: 0, kind: input, shape index: {}]
  %s1 = inlined_call_operand.vmem [shape: bf16[112,128], index: 1, kind: input, shape index: {}]
  %s2 = inlined_call_operand.vmem [shape: f32[16,128], index: 2, kind: output, shape index: {}]
  %s3 = sld [smem:[#allocation0]]
  $region26: #{_lambda_.18} parent=0
    _
  %s5 = ssub.s32 1, %s3
  %s6 = scalar_select 0, %s5, %s3
  // Predicated region
  $region2: #{_lambda_.18} parent=0 // pred_check
    _
  $region3: #{_lambda_.18} parent=0 // pred_check_branch
    %8 = sbr.rel (0) target = $region5
  $region4: #{_lambda_.18} parent=0 // pred_region
    _
  $region5: #{_lambda_.18} parent=0 // pred_fallthru
    _
  // Predicated region
  $region6: #{_lambda_.18} parent=0 // pred_check
    _
  $region7: #{_lambda_.18} parent=0 // pred_check_branch
    %10 = sbr.rel (0) target = $region9
  $region8: #{_lambda_.18} parent=0 // pred_region
    _
  $region9: #{_lambda_.18} parent=0 // pred_fallthru
    _
  %p12 = scmp.eq.s32.totalorder 0, 0
  // Predicated region
  $region10: #{_lambda_.18} parent=0 // pred_check
    %p13 = pneg %p12
  $region11: #{_lambda_.18} parent=0 // pred_check_branch
    %15 = sbr.rel (%p13) target = $region13
  $region12: #{_lambda_.18} parent=0 // pred_region
    %16 = vst [vmem:[#allocation2] sm:$0xff] 0.0
    %17 = vst [vmem:[#allocation2 + $0x8] sm:$0xff] 0.0
  $region13: #{_lambda_.18} parent=0 // pred_fallthru
    _
  %v18 = vld [vmem:[#allocation2] sm:$0xff]
  %v19 = vld [vmem:[#allocation2 + $0x8] sm:$0xff]
  %v20 = vld [vmem:[%s0] sm:$0xf]
  %v21 = vld [vmem:[%s0 + $0x4] sm:$0xf]
  %v22 = vld [vmem:[%s1] sm:$0xf]
  %v23 = vld [vmem:[%s1 + $0x4] sm:$0xf]
  %v24 = vld [vmem:[%s1 + $0x8] sm:$0xf]
  %v25 = vld [vmem:[%s1 + $0xc] sm:$0xf]
  %v26 = vld [vmem:[%s1 + $0x10] sm:$0xf]
  %v27 = vld [vmem:[%s1 + $0x14] sm:$0xf]
  %v28 = vld [vmem:[%s1 + $0x18] sm:$0xf]
  %v29 = vld [vmem:[%s1 + $0x1c] sm:$0xf]
  %v30 = vld [vmem:[%s1 + $0x20] sm:$0xf]
  %v31 = vld [vmem:[%s1 + $0x24] sm:$0xf]
  %v32 = vld [vmem:[%s1 + $0x28] sm:$0xf]
  %v33 = vld [vmem:[%s1 + $0x2c] sm:$0xf]
  %v34 = vld [vmem:[%s1 + $0x30] sm:$0xf]
  %v35 = vld [vmem:[%s1 + $0x34] sm:$0xf]
  %v38 = vunpack.c.l.b16 %v20
  %v39 = vunpack.c.l.b16 %v21
  %v40 = vpack.c.b16 %v39, %v38
  %v55 = vunpack.c.l.b16 %v22
  %v56 = vunpack.c.l.b16 %v23
  %v57 = vunpack.c.l.b16 %v24
  %v58 = vunpack.c.l.b16 %v25
  %v59 = vunpack.c.l.b16 %v26
  %v60 = vunpack.c.l.b16 %v27
  %v61 = vunpack.c.l.b16 %v28
  %v62 = vunpack.c.l.b16 %v29
  %v63 = vunpack.c.l.b16 %v30
  %v64 = vunpack.c.l.b16 %v31
  %v65 = vunpack.c.l.b16 %v32
  %v66 = vunpack.c.l.b16 %v33
  %v67 = vunpack.c.l.b16 %v34
  %v68 = vunpack.c.l.b16 %v35
  %v69 = vpack.c.b16 %v56, %v55
  %v70 = vpack.c.b16 %v58, %v57
  %v71 = vpack.c.b16 %v60, %v59
  %v72 = vpack.c.b16 %v62, %v61
  %v73 = vpack.c.b16 %v64, %v63
  %v74 = vpack.c.b16 %v66, %v65
  %v75 = vpack.c.b16 %v68, %v67
  %vm83 = vcmask 916480
  %v85 = vsel %vm83, %v40, 0
  %87 = vmatprep.subr.bf16.mxu0 0
  %88 = vmatpush1.bf16.msra.mxu0 %v69
  %89 = vmatprep.subr.bf16.mxu0 0
  %90 = vmatpush1.bf16.msra.mxu0 %v70
  %91 = vmatprep.subr.bf16.mxu0 0
  %92 = vmatpush1.bf16.msra.mxu0 %v71
  %93 = vmatprep.subr.bf16.mxu0 0
  %94 = vmatpush1.bf16.msra.mxu0 %v72
  %95 = vmatprep.subr.bf16.mxu0 0
  %96 = vmatpush1.bf16.msra.mxu0 %v73
  %97 = vmatprep.subr.bf16.mxu0 0
  %98 = vmatpush1.bf16.msra.mxu0 %v74
  %99 = vmatprep.subr.bf16.mxu0 0
  %100 = vmatpush1.bf16.msra.mxu0 %v75
  %101 = vmatprep.subr.bf16.mxu0 0
  %102 = vmatpush1.bf16.msra.mxu0 0
  %103 = vmatprep.subr.bf16.mxu0 0
  %104 = vmatpush1.bf16.msra.mxu0 0
  %105 = vmatprep.subr.bf16.mxu0 0
  %106 = vmatpush1.bf16.msra.mxu0 0
  %107 = vmatprep.subr.bf16.mxu0 0
  %108 = vmatpush1.bf16.msra.mxu0 0
  %109 = vmatprep.subr.bf16.mxu0 0
  %110 = vmatpush1.bf16.msra.mxu0 0
  %111 = vmatprep.subr.bf16.mxu0 0
  %112 = vmatpush1.bf16.msra.mxu0 0
  %113 = vmatprep.subr.bf16.mxu0 0
  %114 = vmatpush1.bf16.msra.mxu0 0
  %115 = vmatprep.subr.bf16.mxu0 0
  %116 = vmatpush1.bf16.msra.mxu0 0
  %117 = vmatprep.subr.bf16.mxu0 0
  %118 = vmatpush1.bf16.msra.mxu0 0
  %119 = vmatprep.mubr.bf16.mxu0 0
  %120 = vmatmul.mubr.bf16.gmra.mrb[0].mxu0 %v85
  %v121 = vpop.f32.mrb[0].mxu0
  %v122 = vadd.f32 0.0, %v121
  %v123 = vpop.f32.mrb[0].mxu0
  %v124 = vpop.f32.mrb[0].mxu0
  %v125 = vadd.f32 0.0, %v124
  %v126 = vpop.f32.mrb[0].mxu0
  %127 = vdwg.mxu0
  %v128 = vadd.f32 %v18, %v122
  %v129 = vadd.f32 %v19, %v125
  %130 = vst [vmem:[#allocation2] sm:$0xff] %v128
  %131 = vst [vmem:[#allocation2 + $0x8] sm:$0xff] %v129
  // Predicated region
  $region14: #{_lambda_.18} parent=0 // pred_check
    %p132 = pneg %p12
  $region15: #{_lambda_.18} parent=0 // pred_check_branch
    %134 = sbr.rel (%p132) target = $region17
  $region16: #{_lambda_.18} parent=0 // pred_region
    %v135 = vld [vmem:[#allocation2] sm:$0xff]
    %v136 = vld [vmem:[#allocation2 + $0x8] sm:$0xff]
    %137 = vst [vmem:[%s2] sm:$0xff] %v135
    %138 = vst [vmem:[%s2 + $0x8] sm:$0xff] %v136
  $region17: #{_lambda_.18} parent=0 // pred_fallthru
    _
  // Predicated region
  $region18: #{_lambda_.18} parent=0 // pred_check
    _
  $region19: #{_lambda_.18} parent=0 // pred_check_branch
    %140 = sbr.rel (0) target = $region21
  $region20: #{_lambda_.18} parent=0 // pred_region
    _
  $region21: #{_lambda_.18} parent=0 // pred_fallthru
    _
  // Predicated region
  $region22: #{_lambda_.18} parent=0 // pred_check
    _
  $region23: #{_lambda_.18} parent=0 // pred_check_branch
    %142 = sbr.rel (0) target = $region25
  $region24: #{_lambda_.18} parent=0 // pred_region
    _
  $region25: #{_lambda_.18} parent=0 // pred_fallthru
    _

// kernel: _lambda_.22
$region0: #{_lambda_.22}
  #allocation0 [shape = 'u32[]', space=smem, size = 0x4, offset = 0x4, fixed_abs, tag = 'smem constant byte address 0x4 - core index']
  #allocation1 [shape = 'u32[144,128]{1,0:T(1,128)}', space=vmem, size = 0x12000, scoped, tag = 'internal scratch']
  %s0 = inlined_call_operand.vmem [shape: f32[16,64], index: 0, kind: input, shape index: {}]
  %s1 = inlined_call_operand.vmem [shape: f32[16,64], index: 1, kind: input, shape index: {}]
  %s2 = inlined_call_operand.vmem [shape: f32[16,64], index: 2, kind: output, shape index: {}]
  %s3 = sld [smem:[#allocation0]]
  $region41: #{_lambda_.22} parent=0
    _
  %s5 = ssub.s32 1, %s3
  %s6 = scalar_select 0, %s5, %s3
  loop: start=0, step=1, limit=4
  $region2: #{_lambda_.22} parent=0 // loop_pre_header
    _
  $region3: #{_lambda_.22} parent=0 // loop_header
    %s8 = sphi 0, %s12
    %p9 = scmp.ge.s32.totalorder %s8, 4
    %s18 = sphi 0, %s20
    %s21 = sphi 0, %s18
    %s22 = sphi 0, %s21
    %s38 = sphi 0, %s22
    %s44 = sphi 0, %s46
    %s47 = sphi 0, %s44
    %s48 = sphi 0, %s47
    %s64 = sphi 0, %s48
    %s70 = sphi 0, %s72
    %s73 = sphi 0, %s70
    %s74 = sphi 0, %s73
    %s90 = sphi 0, %s74
  $region4: #{_lambda_.22} parent=0 // loop_header_branch
    %11 = sbr.rel (%p9) target = $region8
  $region5: #{_lambda_.22} parent=0 // loop_body
    %s13 = ssub.s32 %s8, 1
    %s14 = ssub.s32 %s8, 2
    %s15 = sadd.s32 %s8, 1
    %s16 = ssub.s32 %s8, %s15
    %p17 = scmp.eq.s32.totalorder %s16, 0
    %s19 = sadd.s32 %s18, 1
    %s20 = scalar_select %p17, %s18, %s19
    %p23 = pneg %p17
    %p24 = scmp.eq.s32.totalorder %s8, 1
    %p25 = por %p23, %p24
    %p26 = scmp.ne.s32.totalorder %s18, %s21
    %p27 = scmp.eq.s32.totalorder %s8, 0
    %p28 = por %p26, %p27
    %p29 = scmp.ne.s32.totalorder %s18, %s21
    %p30 = scmp.eq.s32.totalorder %s13, 1
    %p31 = por %p29, %p30
    %p32 = scmp.ne.s32.totalorder %s21, %s22
    %p33 = scmp.eq.s32.totalorder %s13, 0
    %p34 = por %p32, %p33
    %p35 = scmp.ne.s32.totalorder %s21, %s22
    %p36 = scmp.eq.s32.totalorder %s14, 1
    %p37 = por %p35, %p36
    %p39 = scmp.ne.s32.totalorder %s22, %s38
    %p40 = scmp.eq.s32.totalorder %s14, 0
    %p41 = por %p39, %p40
    %s42 = ssub.s32 %s8, %s15
    %p43 = scmp.eq.s32.totalorder %s42, 0
    %s45 = sadd.s32 %s44, 1
    %s46 = scalar_select %p43, %s44, %s45
    %p49 = pneg %p43
    %p50 = scmp.eq.s32.totalorder %s8, 1
    %p51 = por %p49, %p50
    %p52 = scmp.ne.s32.totalorder %s44, %s47
    %p53 = scmp.eq.s32.totalorder %s8, 0
    %p54 = por %p52, %p53
    %p55 = scmp.ne.s32.totalorder %s44, %s47
    %p56 = scmp.eq.s32.totalorder %s13, 1
    %p57 = por %p55, %p56
    %p58 = scmp.ne.s32.totalorder %s47, %s48
    %p59 = scmp.eq.s32.totalorder %s13, 0
    %p60 = por %p58, %p59
    %p61 = scmp.ne.s32.totalorder %s47, %s48
    %p62 = scmp.eq.s32.totalorder %s14, 1
    %p63 = por %p61, %p62
    %p65 = scmp.ne.s32.totalorder %s48, %s64
    %p66 = scmp.eq.s32.totalorder %s14, 0
    %p67 = por %p65, %p66
    %s68 = ssub.s32 %s8, %s15
    %p69 = scmp.eq.s32.totalorder %s68, 0
    %s71 = sadd.s32 %s70, 1
    %s72 = scalar_select %p69, %s70, %s71
    %p75 = pneg %p69
    %p76 = scmp.eq.s32.totalorder %s8, 1
    %p77 = por %p75, %p76
    %p78 = scmp.ne.s32.totalorder %s70, %s73
    %p79 = scmp.eq.s32.totalorder %s8, 0
    %p80 = por %p78, %p79
    %p81 = scmp.ne.s32.totalorder %s70, %s73
    %p82 = scmp.eq.s32.totalorder %s13, 1
    %p83 = por %p81, %p82
    %p84 = scmp.ne.s32.totalorder %s73, %s74
    %p85 = scmp.eq.s32.totalorder %s13, 0
    %p86 = por %p84, %p85
    %p87 = scmp.ne.s32.totalorder %s73, %s74
    %p88 = scmp.eq.s32.totalorder %s14, 1
    %p89 = por %p87, %p88
    %p91 = scmp.ne.s32.totalorder %s74, %s90
    %p92 = scmp.eq.s32.totalorder %s14, 0
    %p93 = por %p91, %p92
    %p94 = scmp.le.s32.totalorder 1, %s8
    %p95 = scmp.lt.s32.totalorder %s8, 3
    %p96 = pnand %p94, %p95
    %p97 = pneg %p96
    // Predicated region
    $region9: #{_lambda_.22} parent=5 // pred_check
      _
    $region10: #{_lambda_.22} parent=5 // pred_check_branch
      %99 = sbr.rel (%p96) target = $region12
    $region11: #{_lambda_.22} parent=5 // pred_region
      %s100 = ssub.s32 %s8, 1
    $region12: #{_lambda_.22} parent=5 // pred_fallthru
      _
    %p101 = scmp.lt.s32.totalorder %s8, 2
    // Predicated region
    $region13: #{_lambda_.22} parent=5 // pred_check
      %p102 = pneg %p101
    $region14: #{_lambda_.22} parent=5 // pred_check_branch
      %104 = sbr.rel (%p102) target = $region16
    $region15: #{_lambda_.22} parent=5 // pred_region
      // Predicated region
      $region17: #{_lambda_.22} parent=15 // pred_check
        %p105 = pneg %p28
      $region18: #{_lambda_.22} parent=15 // pred_check_branch
        %107 = sbr.rel (%p105) target = $region20
      $region19: #{_lambda_.22} parent=15 // pred_region
        %p108 = scmp.lt.s32.totalorder %s8, 1
        %s109 = scalar_select %p108, %s8, 1
        %s110 = smul.addr %s109, 8
        %s111 = scalar_lea.vmem %s0, %s110
      $region20: #{_lambda_.22} parent=15 // pred_fallthru
        _
      // Predicated region
      $region21: #{_lambda_.22} parent=15 // pred_check
        %p112 = pneg %p54
      $region22: #{_lambda_.22} parent=15 // pred_check_branch
        %114 = sbr.rel (%p112) target = $region24
      $region23: #{_lambda_.22} parent=15 // pred_region
        %p115 = scmp.lt.s32.totalorder %s8, 1
        %s116 = scalar_select %p115, %s8, 1
        %s117 = smul.addr %s116, 8
        %s118 = scalar_lea.vmem %s1, %s117
      $region24: #{_lambda_.22} parent=15 // pred_fallthru
        _
    $region16: #{_lambda_.22} parent=5 // pred_fallthru
      _
    %p119 = scmp.le.s32.totalorder 1, %s8
    %p120 = scmp.lt.s32.totalorder %s8, 3
    %p121 = pnand %p119, %p120
    %p122 = pneg %p121
    // Predicated region
    $region25: #{_lambda_.22} parent=5 // pred_check
      _
    $region26: #{_lambda_.22} parent=5 // pred_check_branch
      %124 = sbr.rel (%p121) target = $region28
    $region27: #{_lambda_.22} parent=5 // pred_region
      %s125 = ssub.s32 %s8, 1
      %p126 = scmp.lt.s32.totalorder %s13, 1
      %s127 = scalar_select %p126, %s13, 1
      %s128 = smul.addr %s127, 8
      %s129 = scalar_lea.vmem %s0, %s128
      %p130 = pneg %p34
      %p131 = pneg %p31
      %p132 = scmp.lt.s32.totalorder %s13, 1
      %s133 = scalar_select %p132, %s13, 1
      %s134 = smul.addr %s133, 8
      %s135 = scalar_lea.vmem %s1, %s134
      %p136 = pneg %p60
      %p137 = pneg %p57
      %p138 = pneg %p86
      %p139 = pneg %p83
      %p140 = scmp.lt.s32.totalorder %s13, 1
      %s141 = scalar_select %p140, %s13, 1
      %s142 = smul.addr %s141, 8
      %s143 = scalar_lea.vmem %s2, %s142
      %p144 = scmp.lt.s32.totalorder %s13, 1
      %s145 = scalar_select %p144, %s13, 1
      %s146 = smul.addr %s145, 8
      %s147 = scalar_lea.vmem %s0, %s146
      %p148 = scmp.lt.s32.totalorder %s13, 1
      %s149 = scalar_select %p148, %s13, 1
      %s150 = smul.addr %s149, 8
      %s151 = scalar_lea.vmem %s1, %s150
      %p152 = scmp.lt.s32.totalorder %s13, 1
      %s153 = scalar_select %p152, %s13, 1
      %s154 = smul.addr %s153, 8
      %s155 = scalar_lea.vmem %s2, %s154
      %v156 = vld [vmem:[%s147] sm:$0xff]
      %vm157 = vcmask 523264
      %v158 = vsel %vm157, %v156, 0.0
      %159 = vadd.xlane.f32.xlu0 %v158
      %v160 = vpop.xlane.xlu0 %159
      %v161 = vrcp.pop 64.0
      %v162 = vmul.f32 %v160, %v161
      %v163 = vsub.f32 %v156, %v162
      %v164 = vmul.f32 %v163, %v163
      %v165 = vsel %vm157, %v164, 0.0
      %166 = vadd.xlane.f32.xlu0 %v165
      %v167 = vpop.xlane.xlu0 %166
      %v168 = vmul.f32 %v167, %v161
      %v169 = vadd.f32 %v168, 1e-05
      %v170 = vrsqrt.pop %v169
      %v171 = vmul.f32 %v163, %v170
      %v172 = vld [vmem:[%s151] sm:$0xff]
      %v173 = vadd.f32 %v171, %v172
      %v174 = vmax.f32 %v173, 0.0
      %175 = vst.msk [vmem:[%s155] sm:$0xff] %vm157, %v174
      %p176 = scmp.lt.s32.totalorder %s13, 1
      %s177 = scalar_select %p176, %s13, 1
      %s178 = smul.addr %s177, 8
      %s179 = scalar_lea.vmem %s2, %s178
      // Predicated region
      $region29: #{_lambda_.22} parent=27 // pred_check
        %p180 = pneg %p83
      $region30: #{_lambda_.22} parent=27 // pred_check_branch
        %182 = sbr.rel (%p180) target = $region32
      $region31: #{_lambda_.22} parent=27 // pred_region
        _
      $region32: #{_lambda_.22} parent=27 // pred_fallthru
        _
    $region28: #{_lambda_.22} parent=5 // pred_fallthru
      _
    %p183 = scmp.le.s32.totalorder 2, %s8
    // Predicated region
    $region33: #{_lambda_.22} parent=5 // pred_check
      %p184 = pneg %p183
    $region34: #{_lambda_.22} parent=5 // pred_check_branch
      %186 = sbr.rel (%p184) target = $region36
    $region35: #{_lambda_.22} parent=5 // pred_region
      %s187 = ssub.s32 %s8, 2
      // Predicated region
      $region37: #{_lambda_.22} parent=35 // pred_check
        %p188 = pneg %p89
      $region38: #{_lambda_.22} parent=35 // pred_check_branch
        %190 = sbr.rel (%p188) target = $region40
      $region39: #{_lambda_.22} parent=35 // pred_region
        %p191 = scmp.lt.s32.totalorder %s14, 1
        %s192 = scalar_select %p191, %s14, 1
        %s193 = smul.addr %s192, 8
        %s194 = scalar_lea.vmem %s2, %s193
      $region40: #{_lambda_.22} parent=35 // pred_fallthru
        _
    $region36: #{_lambda_.22} parent=5 // pred_fallthru
      _
  $region6: #{_lambda_.22} parent=0 // loop_footer
    %s12 = sadd.s32 1, %s8
  $region7: #{_lambda_.22} parent=0 // loop_footer_branch
    %7 = sbr.rel target = $region3
  $region8: #{_lambda_.22} parent=0 // loop_exit
    _

// kernel: _lambda_.20
$region0: #{_lambda_.20}
  #allocation0 [shape = 'u32[]', space=smem, size = 0x4, offset = 0x4, fixed_abs, tag = 'smem constant byte address 0x4 - core index']
  #allocation1 [shape = 'u32[144,128]{1,0:T(1,128)}', space=vmem, size = 0x12000, scoped, tag = 'internal scratch']
  #allocation2 [shape = 'f32[16,128]{1,0:T(8,128)}', space=vmem, size = 0x2000, scoped, tag = 'scratch operand']
  %s0 = inlined_call_operand.vmem [shape: bf16[16,224], index: 0, kind: input, shape index: {}]
  %s1 = inlined_call_operand.vmem [shape: bf16[224,128], index: 1, kind: input, shape index: {}]
  %s2 = inlined_call_operand.vmem [shape: f32[16,128], index: 2, kind: output, shape index: {}]
  %s3 = sld [smem:[#allocation0]]
  $region26: #{_lambda_.20} parent=0
    _
  %s5 = ssub.s32 1, %s3
  %s6 = scalar_select 0, %s5, %s3
  // Predicated region
  $region2: #{_lambda_.20} parent=0 // pred_check
    _
  $region3: #{_lambda_.20} parent=0 // pred_check_branch
    %8 = sbr.rel (0) target = $region5
  $region4: #{_lambda_.20} parent=0 // pred_region
    _
  $region5: #{_lambda_.20} parent=0 // pred_fallthru
    _
  // Predicated region
  $region6: #{_lambda_.20} parent=0 // pred_check
    _
  $region7: #{_lambda_.20} parent=0 // pred_check_branch
    %10 = sbr.rel (0) target = $region9
  $region8: #{_lambda_.20} parent=0 // pred_region
    _
  $region9: #{_lambda_.20} parent=0 // pred_fallthru
    _
  %p12 = scmp.eq.s32.totalorder 0, 0
  // Predicated region
  $region10: #{_lambda_.20} parent=0 // pred_check
    %p13 = pneg %p12
  $region11: #{_lambda_.20} parent=0 // pred_check_branch
    %15 = sbr.rel (%p13) target = $region13
  $region12: #{_lambda_.20} parent=0 // pred_region
    %16 = vst [vmem:[#allocation2] sm:$0xff] 0.0
    %17 = vst [vmem:[#allocation2 + $0x8] sm:$0xff] 0.0
  $region13: #{_lambda_.20} parent=0 // pred_fallthru
    _
  %v18 = vld [vmem:[#allocation2] sm:$0xff]
  %v19 = vld [vmem:[#allocation2 + $0x8] sm:$0xff]
  %v20 = vld [vmem:[%s0] sm:$0xff]
  %v21 = vld [vmem:[%s0 + $0x8] sm:$0xff]
  %v22 = vld [vmem:[%s1] sm:$0xf]
  %v23 = vld [vmem:[%s1 + $0x4] sm:$0xf]
  %v24 = vld [vmem:[%s1 + $0x8] sm:$0xf]
  %v25 = vld [vmem:[%s1 + $0xc] sm:$0xf]
  %v26 = vld [vmem:[%s1 + $0x10] sm:$0xf]
  %v27 = vld [vmem:[%s1 + $0x14] sm:$0xf]
  %v28 = vld [vmem:[%s1 + $0x18] sm:$0xf]
  %v29 = vld [vmem:[%s1 + $0x1c] sm:$0xf]
  %v30 = vld [vmem:[%s1 + $0x20] sm:$0xf]
  %v31 = vld [vmem:[%s1 + $0x24] sm:$0xf]
  %v32 = vld [vmem:[%s1 + $0x28] sm:$0xf]
  %v33 = vld [vmem:[%s1 + $0x2c] sm:$0xf]
  %v34 = vld [vmem:[%s1 + $0x30] sm:$0xf]
  %v35 = vld [vmem:[%s1 + $0x34] sm:$0xf]
  %v36 = vld [vmem:[%s1 + $0x38] sm:$0xf]
  %v37 = vld [vmem:[%s1 + $0x3c] sm:$0xf]
  %v38 = vld [vmem:[%s1 + $0x40] sm:$0xf]
  %v39 = vld [vmem:[%s1 + $0x44] sm:$0xf]
  %v40 = vld [vmem:[%s1 + $0x48] sm:$0xf]
  %v41 = vld [vmem:[%s1 + $0x4c] sm:$0xf]
  %v42 = vld [vmem:[%s1 + $0x50] sm:$0xf]
  %v43 = vld [vmem:[%s1 + $0x54] sm:$0xf]
  %v44 = vld [vmem:[%s1 + $0x58] sm:$0xf]
  %v45 = vld [vmem:[%s1 + $0x5c] sm:$0xf]
  %v46 = vld [vmem:[%s1 + $0x60] sm:$0xf]
  %v47 = vld [vmem:[%s1 + $0x64] sm:$0xf]
  %v48 = vld [vmem:[%s1 + $0x68] sm:$0xf]
  %v49 = vld [vmem:[%s1 + $0x6c] sm:$0xf]
  %v52 = vunpack.c.l.b16 %v20
  %v53 = vunpack.c.h.b16 %v20
  %v54 = vunpack.c.l.b16 %v21
  %v55 = vunpack.c.h.b16 %v21
  %v56 = vpack.c.b16 %v54, %v52
  %v57 = vpack.c.b16 %v55, %v53
  %v87 = vunpack.c.l.b16 %v22
  %v88 = vunpack.c.l.b16 %v23
  %v89 = vunpack.c.l.b16 %v24
  %v90 = vunpack.c.l.b16 %v25
  %v91 = vunpack.c.l.b16 %v26
  %v92 = vunpack.c.l.b16 %v27
  %v93 = vunpack.c.l.b16 %v28
  %v94 = vunpack.c.l.b16 %v29
  %v95 = vunpack.c.l.b16 %v30
  %v96 = vunpack.c.l.b16 %v31
  %v97 = vunpack.c.l.b16 %v32
  %v98 = vunpack.c.l.b16 %v33
  %v99 = vunpack.c.l.b16 %v34
  %v100 = vunpack.c.l.b16 %v35
  %v101 = vunpack.c.l.b16 %v36
  %v102 = vunpack.c.l.b16 %v37
  %v103 = vunpack.c.l.b16 %v38
  %v104 = vunpack.c.l.b16 %v39
  %v105 = vunpack.c.l.b16 %v40
  %v106 = vunpack.c.l.b16 %v41
  %v107 = vunpack.c.l.b16 %v42
  %v108 = vunpack.c.l.b16 %v43
  %v109 = vunpack.c.l.b16 %v44
  %v110 = vunpack.c.l.b16 %v45
  %v111 = vunpack.c.l.b16 %v46
  %v112 = vunpack.c.l.b16 %v47
  %v113 = vunpack.c.l.b16 %v48
  %v114 = vunpack.c.l.b16 %v49
  %v115 = vpack.c.b16 %v88, %v87
  %v116 = vpack.c.b16 %v90, %v89
  %v117 = vpack.c.b16 %v92, %v91
  %v118 = vpack.c.b16 %v94, %v93
  %v119 = vpack.c.b16 %v96, %v95
  %v120 = vpack.c.b16 %v98, %v97
  %v121 = vpack.c.b16 %v100, %v99
  %v122 = vpack.c.b16 %v102, %v101
  %v123 = vpack.c.b16 %v104, %v103
  %v124 = vpack.c.b16 %v106, %v105
  %v125 = vpack.c.b16 %v108, %v107
  %v126 = vpack.c.b16 %v110, %v109
  %v127 = vpack.c.b16 %v112, %v111
  %v128 = vpack.c.b16 %v114, %v113
  %vm143 = vcmask 785408
  %v145 = vsel %vm143, %v57, 0
  %147 = vmatprep.subr.bf16.mxu0 0
  %148 = vmatpush1.bf16.msra.mxu0 %v115
  %149 = vmatprep.subr.bf16.mxu0 0
  %150 = vmatpush1.bf16.msra.mxu0 %v116
  %151 = vmatprep.subr.bf16.mxu0 0
  %152 = vmatpush1.bf16.msra.mxu0 %v117
  %153 = vmatprep.subr.bf16.mxu0 0
  %154 = vmatpush1.bf16.msra.mxu0 %v118
  %155 = vmatprep.subr.bf16.mxu0 0
  %156 = vmatpush1.bf16.msra.mxu0 %v119
  %157 = vmatprep.subr.bf16.mxu0 0
  %158 = vmatpush1.bf16.msra.mxu0 %v120
  %159 = vmatprep.subr.bf16.mxu0 0
  %160 = vmatpush1.bf16.msra.mxu0 %v121
  %161 = vmatprep.subr.bf16.mxu0 0
  %162 = vmatpush1.bf16.msra.mxu0 %v122
  %163 = vmatprep.subr.bf16.mxu0 0
  %164 = vmatpush1.bf16.msra.mxu0 %v123
  %165 = vmatprep.subr.bf16.mxu0 0
  %166 = vmatpush1.bf16.msra.mxu0 %v124
  %167 = vmatprep.subr.bf16.mxu0 0
  %168 = vmatpush1.bf16.msra.mxu0 %v125
  %169 = vmatprep.subr.bf16.mxu0 0
  %170 = vmatpush1.bf16.msra.mxu0 %v126
  %171 = vmatprep.subr.bf16.mxu0 0
  %172 = vmatpush1.bf16.msra.mxu0 %v127
  %173 = vmatprep.subr.bf16.mxu0 0
  %174 = vmatpush1.bf16.msra.mxu0 %v128
  %175 = vmatprep.subr.bf16.mxu0 0
  %176 = vmatpush1.bf16.msra.mxu0 0
  %177 = vmatprep.subr.bf16.mxu0 0
  %178 = vmatpush1.bf16.msra.mxu0 0
  %179 = vmatprep.mubr.bf16.mxu0 %v145
  %180 = vmatmul.mubr.bf16.gmra.mrb[0].mxu0 %v56
  %v181 = vpop.f32.mrb[0].mxu0
  %v182 = vadd.f32 0.0, %v181
  %v183 = vpop.f32.mrb[0].mxu0
  %v184 = vpop.f32.mrb[0].mxu0
  %v185 = vadd.f32 0.0, %v184
  %v186 = vpop.f32.mrb[0].mxu0
  %187 = vdwg.mxu0
  %v188 = vadd.f32 %v18, %v182
  %v189 = vadd.f32 %v19, %v185
  %190 = vst [vmem:[#allocation2] sm:$0xff] %v188
  %191 = vst [vmem:[#allocation2 + $0x8] sm:$0xff] %v189
  // Predicated region
  $region14: #{_lambda_.20} parent=0 // pred_check
    %p192 = pneg %p12
  $region15: #{_lambda_.20} parent=0 // pred_check_branch
    %194 = sbr.rel (%p192) target = $region17
  $region16: #{_lambda_.20} parent=0 // pred_region
    %v195 = vld [vmem:[#allocation2] sm:$0xff]
    %v196 = vld [vmem:[#allocation2 + $0x8] sm:$0xff]
    %197 = vst [vmem:[%s2] sm:$0xff] %v195
    %198 = vst [vmem:[%s2 + $0x8] sm:$0xff] %v196
  $region17: #{_lambda_.20} parent=0 // pred_fallthru
    _
  // Predicated region
  $region18: #{_lambda_.20} parent=0 // pred_check
    _
  $region19: #{_lambda_.20} parent=0 // pred_check_branch
    %200 = sbr.rel (0) target = $region21
  $region20: #{_lambda_.20} parent=0 // pred_region
    _
  $region21: #{_lambda_.20} parent=0 // pred_fallthru
    _
  // Predicated region
  $region22: #{_lambda_.20} parent=0 // pred_check
    _
  $region23: #{_lambda_.20} parent=0 // pred_check_branch
    %202 = sbr.rel (0) target = $region25
  $region24: #{_lambda_.20} parent=0 // pred_region
    _
  $region25: #{_lambda_.20} parent=0 // pred_fallthru
    _

// kernel: _lambda_.28
$region0: #{_lambda_.28}
  #allocation0 [shape = 'u32[]', space=smem, size = 0x4, offset = 0x4, fixed_abs, tag = 'smem constant byte address 0x4 - core index']
  #allocation1 [shape = 'u32[144,128]{1,0:T(1,128)}', space=vmem, size = 0x12000, scoped, tag = 'internal scratch']
  #allocation2 [shape = 'f32[16,128]{1,0:T(8,128)}', space=vmem, size = 0x2000, scoped, tag = 'scratch operand']
  %s0 = inlined_call_operand.vmem [shape: bf16[16,64], index: 0, kind: input, shape index: {}]
  %s1 = inlined_call_operand.vmem [shape: bf16[64,128], index: 1, kind: input, shape index: {}]
  %s2 = inlined_call_operand.vmem [shape: f32[16,128], index: 2, kind: output, shape index: {}]
  %s3 = sld [smem:[#allocation0]]
  $region26: #{_lambda_.28} parent=0
    _
  %s5 = ssub.s32 1, %s3
  %s6 = scalar_select 0, %s5, %s3
  // Predicated region
  $region2: #{_lambda_.28} parent=0 // pred_check
    _
  $region3: #{_lambda_.28} parent=0 // pred_check_branch
    %8 = sbr.rel (0) target = $region5
  $region4: #{_lambda_.28} parent=0 // pred_region
    _
  $region5: #{_lambda_.28} parent=0 // pred_fallthru
    _
  // Predicated region
  $region6: #{_lambda_.28} parent=0 // pred_check
    _
  $region7: #{_lambda_.28} parent=0 // pred_check_branch
    %10 = sbr.rel (0) target = $region9
  $region8: #{_lambda_.28} parent=0 // pred_region
    _
  $region9: #{_lambda_.28} parent=0 // pred_fallthru
    _
  %p12 = scmp.eq.s32.totalorder 0, 0
  // Predicated region
  $region10: #{_lambda_.28} parent=0 // pred_check
    %p13 = pneg %p12
  $region11: #{_lambda_.28} parent=0 // pred_check_branch
    %15 = sbr.rel (%p13) target = $region13
  $region12: #{_lambda_.28} parent=0 // pred_region
    %16 = vst [vmem:[#allocation2] sm:$0xff] 0.0
    %17 = vst [vmem:[#allocation2 + $0x8] sm:$0xff] 0.0
  $region13: #{_lambda_.28} parent=0 // pred_fallthru
    _
  %v18 = vld [vmem:[#allocation2] sm:$0xff]
  %v19 = vld [vmem:[#allocation2 + $0x8] sm:$0xff]
  %v20 = vld [vmem:[%s0] sm:$0xf]
  %v21 = vld [vmem:[%s0 + $0x4] sm:$0xf]
  %v22 = vld [vmem:[%s1] sm:$0xf]
  %v23 = vld [vmem:[%s1 + $0x4] sm:$0xf]
  %v24 = vld [vmem:[%s1 + $0x8] sm:$0xf]
  %v25 = vld [vmem:[%s1 + $0xc] sm:$0xf]
  %v26 = vld [vmem:[%s1 + $0x10] sm:$0xf]
  %v27 = vld [vmem:[%s1 + $0x14] sm:$0xf]
  %v28 = vld [vmem:[%s1 + $0x18] sm:$0xf]
  %v29 = vld [vmem:[%s1 + $0x1c] sm:$0xf]
  %v32 = vunpack.c.l.b16 %v20
  %v33 = vunpack.c.l.b16 %v21
  %v34 = vpack.c.b16 %v33, %v32
  %v43 = vunpack.c.l.b16 %v22
  %v44 = vunpack.c.l.b16 %v23
  %v45 = vunpack.c.l.b16 %v24
  %v46 = vunpack.c.l.b16 %v25
  %v47 = vunpack.c.l.b16 %v26
  %v48 = vunpack.c.l.b16 %v27
  %v49 = vunpack.c.l.b16 %v28
  %v50 = vunpack.c.l.b16 %v29
  %v51 = vpack.c.b16 %v44, %v43
  %v52 = vpack.c.b16 %v46, %v45
  %v53 = vpack.c.b16 %v48, %v47
  %v54 = vpack.c.b16 %v50, %v49
  %vm59 = vcmask 523264
  %v61 = vsel %vm59, %v34, 0
  %63 = vmatprep.subr.bf16.mxu0 0
  %64 = vmatpush1.bf16.msra.mxu0 %v51
  %65 = vmatprep.subr.bf16.mxu0 0
  %66 = vmatpush1.bf16.msra.mxu0 %v52
  %67 = vmatprep.subr.bf16.mxu0 0
  %68 = vmatpush1.bf16.msra.mxu0 %v53
  %69 = vmatprep.subr.bf16.mxu0 0
  %70 = vmatpush1.bf16.msra.mxu0 %v54
  %71 = vmatprep.subr.bf16.mxu0 0
  %72 = vmatpush1.bf16.msra.mxu0 0
  %73 = vmatprep.subr.bf16.mxu0 0
  %74 = vmatpush1.bf16.msra.mxu0 0
  %75 = vmatprep.subr.bf16.mxu0 0
  %76 = vmatpush1.bf16.msra.mxu0 0
  %77 = vmatprep.subr.bf16.mxu0 0
  %78 = vmatpush1.bf16.msra.mxu0 0
  %79 = vmatprep.subr.bf16.mxu0 0
  %80 = vmatpush1.bf16.msra.mxu0 0
  %81 = vmatprep.subr.bf16.mxu0 0
  %82 = vmatpush1.bf16.msra.mxu0 0
  %83 = vmatprep.subr.bf16.mxu0 0
  %84 = vmatpush1.bf16.msra.mxu0 0
  %85 = vmatprep.subr.bf16.mxu0 0
  %86 = vmatpush1.bf16.msra.mxu0 0
  %87 = vmatprep.subr.bf16.mxu0 0
  %88 = vmatpush1.bf16.msra.mxu0 0
  %89 = vmatprep.subr.bf16.mxu0 0
  %90 = vmatpush1.bf16.msra.mxu0 0
  %91 = vmatprep.subr.bf16.mxu0 0
  %92 = vmatpush1.bf16.msra.mxu0 0
  %93 = vmatprep.subr.bf16.mxu0 0
  %94 = vmatpush1.bf16.msra.mxu0 0
  %95 = vmatprep.mubr.bf16.mxu0 0
  %96 = vmatmul.mubr.bf16.gmra.mrb[0].mxu0 %v61
  %v97 = vpop.f32.mrb[0].mxu0
  %v98 = vadd.f32 0.0, %v97
  %v99 = vpop.f32.mrb[0].mxu0
  %v100 = vpop.f32.mrb[0].mxu0
  %v101 = vadd.f32 0.0, %v100
  %v102 = vpop.f32.mrb[0].mxu0
  %103 = vdwg.mxu0
  %v104 = vadd.f32 %v18, %v98
  %v105 = vadd.f32 %v19, %v101
  %106 = vst [vmem:[#allocation2] sm:$0xff] %v104
  %107 = vst [vmem:[#allocation2 + $0x8] sm:$0xff] %v105
  // Predicated region
  $region14: #{_lambda_.28} parent=0 // pred_check
    %p108 = pneg %p12
  $region15: #{_lambda_.28} parent=0 // pred_check_branch
    %110 = sbr.rel (%p108) target = $region17
  $region16: #{_lambda_.28} parent=0 // pred_region
    %v111 = vld [vmem:[#allocation2] sm:$0xff]
    %v112 = vld [vmem:[#allocation2 + $0x8] sm:$0xff]
    %113 = vst [vmem:[%s2] sm:$0xff] %v111
    %114 = vst [vmem:[%s2 + $0x8] sm:$0xff] %v112
  $region17: #{_lambda_.28} parent=0 // pred_fallthru
    _
  // Predicated region
  $region18: #{_lambda_.28} parent=0 // pred_check
    _
  $region19: #{_lambda_.28} parent=0 // pred_check_branch
    %116 = sbr.rel (0) target = $region21
  $region20: #{_lambda_.28} parent=0 // pred_region
    _
  $region21: #{_lambda_.28} parent=0 // pred_fallthru
    _
  // Predicated region
  $region22: #{_lambda_.28} parent=0 // pred_check
    _
  $region23: #{_lambda_.28} parent=0 // pred_check_branch
    %118 = sbr.rel (0) target = $region25
  $region24: #{_lambda_.28} parent=0 // pred_region
    _
  $region25: #{_lambda_.28} parent=0 // pred_fallthru
    _

// kernel: _lambda_.35
$region0: #{_lambda_.35}
  #allocation0 [shape = 'u32[]', space=smem, size = 0x4, offset = 0x4, fixed_abs, tag = 'smem constant byte address 0x4 - core index']
  #allocation1 [shape = 'u32[144,128]{1,0:T(1,128)}', space=vmem, size = 0x12000, scoped, tag = 'internal scratch']
  %s0 = inlined_call_operand.vmem [shape: f32[8,512], index: 0, kind: input, shape index: {}]
  %s1 = inlined_call_operand.vmem [shape: f32[8,512], index: 1, kind: output, shape index: {}]
  %s2 = sld [smem:[#allocation0]]
  $region14: #{_lambda_.35} parent=0
    _
  %s4 = ssub.s32 1, %s2
  %s5 = scalar_select 0, %s4, %s2
  // Predicated region
  $region2: #{_lambda_.35} parent=0 // pred_check
    _
  $region3: #{_lambda_.35} parent=0 // pred_check_branch
    %7 = sbr.rel (0) target = $region5
  $region4: #{_lambda_.35} parent=0 // pred_region
    _
  $region5: #{_lambda_.35} parent=0 // pred_fallthru
    _
  %v8 = vld [vmem:[%s0] sm:$0xff]
  %v9 = vld [vmem:[%s0 + $0x8] sm:$0xff]
  %v10 = vld [vmem:[%s0 + $0x10] sm:$0xff]
  %v11 = vld [vmem:[%s0 + $0x18] sm:$0xff]
  %v12 = vadd.f32 %v8, %v9
  %v13 = vadd.f32 %v12, %v10
  %v14 = vadd.f32 %v13, %v11
  %15 = vadd.xlane.f32.xlu0 %v14
  %v16 = vpop.xlane.xlu0 %15
  %v17 = vrcp.pop 512.0
  %v18 = vmul.f32 %v16, %v17
  %v19 = vsub.f32 %v8, %v18
  %v20 = vsub.f32 %v9, %v18
  %v21 = vsub.f32 %v10, %v18
  %v22 = vsub.f32 %v11, %v18
  %v23 = vmul.f32 %v19, %v19
  %v24 = vmul.f32 %v20, %v20
  %v25 = vmul.f32 %v21, %v21
  %v26 = vmul.f32 %v22, %v22
  %v27 = vadd.f32 %v23, %v24
  %v28 = vadd.f32 %v27, %v25
  %v29 = vadd.f32 %v28, %v26
  %30 = vadd.xlane.f32.xlu0 %v29
  %v31 = vpop.xlane.xlu0 %30
  %v32 = vmul.f32 %v31, %v17
  %v33 = vadd.f32 %v32, 1e-05
  %v34 = vrsqrt.pop %v33
  %v35 = vmul.f32 %v19, %v34
  %v36 = vmul.f32 %v20, %v34
  %v37 = vmul.f32 %v21, %v34
  %v38 = vmul.f32 %v22, %v34
  %v39 = vmax.f32 %v35, 0.0
  %v40 = vmax.f32 %v36, 0.0
  %v41 = vmax.f32 %v37, 0.0
  %v42 = vmax.f32 %v38, 0.0
  %43 = vst [vmem:[%s1] sm:$0xff] %v39
  %44 = vst [vmem:[%s1 + $0x8] sm:$0xff] %v40
  %45 = vst [vmem:[%s1 + $0x10] sm:$0xff] %v41
  %46 = vst [vmem:[%s1 + $0x18] sm:$0xff] %v42
  // Predicated region
  $region6: #{_lambda_.35} parent=0 // pred_check
    _
  $region7: #{_lambda_.35} parent=0 // pred_check_branch
    %48 = sbr.rel (0) target = $region9
  $region8: #{_lambda_.35} parent=0 // pred_region
    _
  $region9: #{_lambda_.35} parent=0 // pred_fallthru
    _
  // Predicated region
  $region10: #{_lambda_.35} parent=0 // pred_check
    _
  $region11: #{_lambda_.35} parent=0 // pred_check_branch
    %50 = sbr.rel (0) target = $region13
  $region12: #{_lambda_.35} parent=0 // pred_region
    _
  $region13: #{_lambda_.35} parent=0 // pred_fallthru
    _

</llo_original>
